<compile_context>
chip_gen: v6e
topology: v6e:2x2x1
jax: 0.10.0
libtpu: 0.0.40
codegen_flags: <defaults>
</compile_context>

<pallas_src>
import inspect
import math

import jax
import jax.numpy as jnp
from jax import lax
from jax.experimental import pallas as pl
from jax.experimental.pallas import tpu as pltpu

_INV_SQRT2 = 1.0 / math.sqrt(2.0)


def _round_up(a, b):
    return pl.cdiv(a, b) * b


def _gelu_erf_f32(h):
    # Exact GELU (torch nn.GELU default, approximate='none'), computed in f32.
    return 0.5 * h * (1.0 + lax.erf(h * _INV_SQRT2))


def _make_mlp_kernel(chunk, n_chunks):
    def kernel(x_ref, w1_ref, b1_ref, w2_ref, b2_ref, o_ref, acc_ref):
        x = x_ref[...]
        # Fully-unrolled hidden-dim chunk loop: per chunk do fc1 (MXU), GELU (VALU/EUP),
        # then accumulate the fc2 contribution (MXU) into the f32 VMEM accumulator. The
        # unrolled straight-line code lets the scheduler overlap chunk k's GELU with
        # chunk k+1's fc1 instead of serializing a full MXU phase then a full VALU phase.
        for k in range(n_chunks):
            lo = k * chunk
            h = jnp.dot(x, w1_ref[:, lo:lo + chunk],
                        preferred_element_type=jnp.float32)
            h = h + b1_ref[:, lo:lo + chunk].astype(jnp.float32)
            h = _gelu_erf_f32(h)
            # Feed fc2 in the weight dtype (bf16 stays bf16 on the MXU; no-op for f32).
            h = h.astype(w2_ref.dtype)
            contrib = jnp.dot(h, w2_ref[lo:lo + chunk, :],
                              preferred_element_type=jnp.float32)
            if k == 0:
                acc_ref[...] = contrib
            else:
                acc_ref[...] += contrib
        o = acc_ref[...] + b2_ref[...].astype(jnp.float32)
        # dropout(p=0.0) is identity (eval-mode semantics).
        o_ref[...] = o.astype(o_ref.dtype)

    return kernel


def _weight_pipeline_kwargs():
    """Single-buffer the loop-invariant weight/bias blocks when this JAX supports it.

    Explicit capability check (no broad try/except around the pallas_call): falling back
    silently would double-buffer the resident weights (~2x weight VMEM for real ViT sizes).
    """
    if not hasattr(pl, "Buffered"):
        return {}
    try:
        if "pipeline_mode" not in inspect.signature(pl.BlockSpec).parameters:
            return {}
        pl.BlockSpec((8, 128), lambda i: (0, 0), pipeline_mode=pl.Buffered(1))
    except (TypeError, ValueError):
        return {}
    return dict(pipeline_mode=pl.Buffered(1))


def _vmem_budget_bytes():
    """3/4 of per-core physical VMEM: ~48 MiB on v7x (64 MiB), ~96 MiB on v5e/v6e (128 MiB)."""
    cap = 64 * 1024 * 1024  # conservative fallback: v7x per-core physical size
    if hasattr(pltpu, "get_tpu_info"):
        try:
            cap = int(getattr(pltpu.get_tpu_info(), "vmem_capacity_bytes", cap))
        except Exception:
            pass  # introspection unavailable -> keep conservative fallback
    return (cap // 4) * 3


def _pick_hidden_chunk(d_hid, target):
    """Largest multiple-of-128 divisor of d_hid that is <= target (else no chunking)."""
    if d_hid <= target or d_hid % 128 != 0:
        return d_hid
    c = (target // 128) * 128
    while c >= 128:
        if d_hid % c == 0:
            return c
        c -= 128
    return d_hid


def mlp_pallas(x, w1, b1, w2, b2, *, tile_m=512, hidden_chunk=512):
    """x: (B, N, D_in) -> (B, N, D_out). fc1 + GELU + fc2 fused in one Pallas kernel."""
    B, N, D_in = x.shape
    D_hid = w1.shape[1]
    D_out = w2.shape[1]
    M = B * N

    # Big MXU-friendly row tile, never larger than the (sublane-rounded) row count.
    tile_m = int(max(8, min(tile_m, _round_up(M, 8))))
    # Guarantee >= 2 grid steps when there is enough work so ("parallel",) can shard the
    # row tiles across both TensorCores on v7x.
    if pl.cdiv(M, tile_m) < 2 and M >= 128:
        tile_m = int(_round_up(pl.cdiv(M, 2), 8))
    grid_m = pl.cdiv(M, tile_m)

    # Lane-dense output slab: pad output features (weights/bias only) to 128-lane multiple.
    D_out_p = _round_up(D_out, 128)
    if D_out_p != D_out:
        w2 = jnp.pad(w2, ((0, 0), (0, D_out_p - D_out)))
        b2 = jnp.pad(b2, ((0, D_out_p - D_out),))

    chunk = _pick_hidden_chunk(D_hid, hidden_chunk)
    n_chunks = D_hid // chunk

    x2d = x.reshape(M, D_in)          # leading-dim collapse: no HBM copy
    b1_2d = b1.reshape(1, D_hid)
    b2_2d = b2.reshape(1, D_out_p)

    wkw = _weight_pipeline_kwargs()   # loop-invariant operands: single VMEM buffer

    out2d = pl.pallas_call(
        _make_mlp_kernel(chunk, n_chunks),
        out_shape=jax.ShapeDtypeStruct((M, D_out_p), x.dtype),
        grid_spec=pltpu.PrefetchScalarGridSpec(
            num_scalar_prefetch=0,
            grid=(grid_m,),
            in_specs=[
                pl.BlockSpec((tile_m, D_in), lambda i: (i, 0)),
                pl.BlockSpec((D_in, D_hid), lambda i: (0, 0), **wkw),
                pl.BlockSpec((1, D_hid), lambda i: (0, 0), **wkw),
                pl.BlockSpec((D_hid, D_out_p), lambda i: (0, 0), **wkw),
                pl.BlockSpec((1, D_out_p), lambda i: (0, 0), **wkw),
            ],
            out_specs=pl.BlockSpec((tile_m, D_out_p), lambda i: (i, 0)),
            scratch_shapes=[pltpu.VMEM((tile_m, D_out_p), jnp.float32)],
        ),
        compiler_params=pltpu.CompilerParams(
            dimension_semantics=("parallel",),
            vmem_limit_bytes=_vmem_budget_bytes(),
        ),
    )(x2d, w1, b1_2d, w2, b2_2d)

    if D_out_p != D_out:
        out2d = out2d[:, :D_out]
    return out2d.reshape(B, N, D_out)


def mlp_reference(x, w1, b1, w2, b2):
    x = x.astype(jnp.float32)
    h = jnp.einsum("bnd,dh->bnh", x, w1.astype(jnp.float32)) + b1.astype(jnp.float32)
    h = 0.5 * h * (1.0 + lax.erf(h * _INV_SQRT2))
    return jnp.einsum("bnh,ho->bno", h, w2.astype(jnp.float32)) + b2.astype(jnp.float32)


if __name__ == "__main__":
    # ViT-decoder-like (scaled down): 14x14 patch grid -> 196 tokens per image,
    # embed_dim=128, mlp_ratio=4 -> hidden=512, out=embed_dim.
    B, N, D_in = 2, 196, 128
    D_hid, D_out = 4 * D_in, D_in

    key = jax.random.PRNGKey(0)
    kx, kw1, kb1, kw2, kb2 = jax.random.split(key, 5)

    x = jax.random.normal(kx, (B, N, D_in), dtype=jnp.float32)
    # Linear params stored pre-transposed: (in, hidden), (hidden, out).
    w1 = jax.random.normal(kw1, (D_in, D_hid), dtype=jnp.float32) * (1.0 / math.sqrt(D_in))
    b1 = jax.random.normal(kb1, (D_hid,), dtype=jnp.float32) * 0.01
    w2 = jax.random.normal(kw2, (D_hid, D_out), dtype=jnp.float32) * (1.0 / math.sqrt(D_hid))
    b2 = jax.random.normal(kb2, (D_out,), dtype=jnp.float32) * 0.01

    ref = mlp_reference(x, w1, b1, w2, b2)

    # f32 path with hidden_chunk=256 -> 2 hidden chunks: exercises the chunked fc2
    # accumulation and the bounds-masked trailing row block (M=392 -> tiles of 200).
    out = jax.block_until_ready(mlp_pallas(x, w1, b1, w2, b2, hidden_chunk=256))
    assert out.shape == (B, N, D_out)
    assert jnp.allclose(out, ref, atol=1e-3, rtol=1e-3), "f32 mismatch vs reference"

    # bf16 path (default chunking): operands stay bf16 on the MXU, accumulation/GELU in f32.
    xb, w1b, b1b, w2b, b2b = (a.astype(jnp.bfloat16) for a in (x, w1, b1, w2, b2))
    out_bf16 = jax.block_until_ready(mlp_pallas(xb, w1b, b1b, w2b, b2b))
    ref_bf16 = mlp_reference(xb, w1b, b1b, w2b, b2b)
    assert out_bf16.shape == (B, N, D_out)
    assert out_bf16.dtype == jnp.bfloat16
    assert jnp.allclose(out_bf16.astype(jnp.float32), ref_bf16, atol=5e-2, rtol=5e-2), \
        "bf16 mismatch vs reference"

    print("KERNEL_OK")
</pallas_src>

<mosaic_0001>
module attributes {stable_mosaic.version = 11 : i64} {
  func.func @kernel(%arg0: i32, %arg1: memref<200x128xf32, #tpu.memory_space<vmem>>, %arg2: memref<128x512xf32, #tpu.memory_space<vmem>>, %arg3: memref<1x512xf32, #tpu.memory_space<vmem>>, %arg4: memref<512x128xf32, #tpu.memory_space<vmem>>, %arg5: memref<1x128xf32, #tpu.memory_space<vmem>>, %arg6: memref<200x128xf32, #tpu.memory_space<vmem>>, %arg7: memref<200x128xf32, #tpu.memory_space<vmem>>) attributes {dimension_semantics = [#tpu.dimension_semantics<parallel>], iteration_bounds = array<i64: 2>, scalar_prefetch = 0 : i64, scratch_operands = 1 : i64, tpu.core_type = #tpu.core_type<tc>, window_params = [{transform_indices = @transform_0, window_bounds = array<i64: 200, 128>}, {pipeline_mode = #tpu.pipeline_mode<synchronous>, transform_indices = @transform_1, window_bounds = array<i64: 128, 512>}, {pipeline_mode = #tpu.pipeline_mode<synchronous>, transform_indices = @transform_2, window_bounds = array<i64: 1, 512>}, {pipeline_mode = #tpu.pipeline_mode<synchronous>, transform_indices = @transform_3, window_bounds = array<i64: 512, 128>}, {pipeline_mode = #tpu.pipeline_mode<synchronous>, transform_indices = @transform_4, window_bounds = array<i64: 1, 128>}, {transform_indices = @transform_5, window_bounds = array<i64: 200, 128>}]} {
    %c0 = arith.constant 0 : index
    %c0_0 = arith.constant 0 : index
    %0 = vector.load %arg1[%c0, %c0_0] : memref<200x128xf32, #tpu.memory_space<vmem>>, vector<200x128xf32>
    %c0_1 = arith.constant 0 : index
    %c0_2 = arith.constant 0 : index
    %1 = vector.load %arg2[%c0_1, %c0_2] : memref<128x512xf32, #tpu.memory_space<vmem>>, vector<128x256xf32>
    %cst = arith.constant dense<0.000000e+00> : vector<200x256xf32>
    %2 = tpu.matmul %0, %1, %cst {dimension_numbers = #tpu.dot_dimension_numbers<[1], [0], [0], [1], [0, 0, 1, 1], [], []>} : vector<200x128xf32>, vector<128x256xf32>, vector<200x256xf32> -> vector<200x256xf32>
    %c0_3 = arith.constant 0 : index
    %c0_4 = arith.constant 0 : index
    %3 = vector.load %arg3[%c0_3, %c0_4] : memref<1x512xf32, #tpu.memory_space<vmem>>, vector<1x256xf32>
    %4 = vector.broadcast %3 : vector<1x256xf32> to vector<200x256xf32>
    %5 = arith.addf %2, %4 : vector<200x256xf32>
    %cst_5 = arith.constant 5.000000e-01 : f32
    %6 = vector.broadcast %cst_5 : f32 to vector<200x256xf32>
    %7 = arith.mulf %6, %5 : vector<200x256xf32>
    %cst_6 = arith.constant 0.707106769 : f32
    %8 = vector.broadcast %cst_6 : f32 to vector<200x256xf32>
    %9 = arith.mulf %5, %8 : vector<200x256xf32>
    %10 = math.erf %9 : vector<200x256xf32>
    %cst_7 = arith.constant 1.000000e+00 : f32
    %11 = vector.broadcast %cst_7 : f32 to vector<200x256xf32>
    %12 = arith.addf %11, %10 : vector<200x256xf32>
    %13 = arith.mulf %7, %12 : vector<200x256xf32>
    %c0_8 = arith.constant 0 : index
    %c0_9 = arith.constant 0 : index
    %14 = vector.load %arg4[%c0_8, %c0_9] : memref<512x128xf32, #tpu.memory_space<vmem>>, vector<256x128xf32>
    %cst_10 = arith.constant dense<0.000000e+00> : vector<200x128xf32>
    %15 = tpu.matmul %13, %14, %cst_10 {dimension_numbers = #tpu.dot_dimension_numbers<[1], [0], [0], [1], [0, 0, 1, 1], [], []>} : vector<200x256xf32>, vector<256x128xf32>, vector<200x128xf32> -> vector<200x128xf32>
    %c0_11 = arith.constant 0 : index
    %c0_12 = arith.constant 0 : index
    %16 = vector.load %arg7[%c0_11, %c0_12] : memref<200x128xf32, #tpu.memory_space<vmem>>, vector<200x128xf32>
    tpu.vector_store %arg7[%c0_11, %c0_12], %15 {strides = array<i32>} : memref<200x128xf32, #tpu.memory_space<vmem>>, vector<200x128xf32>,
    %c0_13 = arith.constant 0 : index
    %c256 = arith.constant 256 : index
    %17 = vector.load %arg2[%c0_13, %c256] : memref<128x512xf32, #tpu.memory_space<vmem>>, vector<128x256xf32>
    %cst_14 = arith.constant dense<0.000000e+00> : vector<200x256xf32>
    %18 = tpu.matmul %0, %17, %cst_14 {dimension_numbers = #tpu.dot_dimension_numbers<[1], [0], [0], [1], [0, 0, 1, 1], [], []>} : vector<200x128xf32>, vector<128x256xf32>, vector<200x256xf32> -> vector<200x256xf32>
    %c0_15 = arith.constant 0 : index
    %c256_16 = arith.constant 256 : index
    %19 = vector.load %arg3[%c0_15, %c256_16] : memref<1x512xf32, #tpu.memory_space<vmem>>, vector<1x256xf32>
    %20 = vector.broadcast %19 : vector<1x256xf32> to vector<200x256xf32>
    %21 = arith.addf %18, %20 : vector<200x256xf32>
    %cst_17 = arith.constant 5.000000e-01 : f32
    %22 = vector.broadcast %cst_17 : f32 to vector<200x256xf32>
    %23 = arith.mulf %22, %21 : vector<200x256xf32>
    %cst_18 = arith.constant 0.707106769 : f32
    %24 = vector.broadcast %cst_18 : f32 to vector<200x256xf32>
    %25 = arith.mulf %21, %24 : vector<200x256xf32>
    %26 = math.erf %25 : vector<200x256xf32>
    %cst_19 = arith.constant 1.000000e+00 : f32
    %27 = vector.broadcast %cst_19 : f32 to vector<200x256xf32>
    %28 = arith.addf %27, %26 : vector<200x256xf32>
    %29 = arith.mulf %23, %28 : vector<200x256xf32>
    %c256_20 = arith.constant 256 : index
    %c0_21 = arith.constant 0 : index
    %30 = vector.load %arg4[%c256_20, %c0_21] : memref<512x128xf32, #tpu.memory_space<vmem>>, vector<256x128xf32>
    %cst_22 = arith.constant dense<0.000000e+00> : vector<200x128xf32>
    %31 = tpu.matmul %29, %30, %cst_22 {dimension_numbers = #tpu.dot_dimension_numbers<[1], [0], [0], [1], [0, 0, 1, 1], [], []>} : vector<200x256xf32>, vector<256x128xf32>, vector<200x128xf32> -> vector<200x128xf32>
    %c0_23 = arith.constant 0 : index
    %c0_24 = arith.constant 0 : index
    %32 = vector.load %arg7[%c0_23, %c0_24] : memref<200x128xf32, #tpu.memory_space<vmem>>, vector<200x128xf32>
    %33 = arith.addf %32, %31 : vector<200x128xf32>
    %c0_25 = arith.constant 0 : index
    %c0_26 = arith.constant 0 : index
    %34 = vector.load %arg7[%c0_25, %c0_26] : memref<200x128xf32, #tpu.memory_space<vmem>>, vector<200x128xf32>
    tpu.vector_store %arg7[%c0_25, %c0_26], %33 {strides = array<i32>} : memref<200x128xf32, #tpu.memory_space<vmem>>, vector<200x128xf32>,
    %c0_27 = arith.constant 0 : index
    %c0_28 = arith.constant 0 : index
    %35 = vector.load %arg7[%c0_27, %c0_28] : memref<200x128xf32, #tpu.memory_space<vmem>>, vector<200x128xf32>
    %c0_29 = arith.constant 0 : index
    %c0_30 = arith.constant 0 : index
    %36 = vector.load %arg5[%c0_29, %c0_30] : memref<1x128xf32, #tpu.memory_space<vmem>>, vector<1x128xf32>
    %37 = vector.broadcast %36 : vector<1x128xf32> to vector<200x128xf32>
    %38 = arith.addf %35, %37 : vector<200x128xf32>
    %c0_31 = arith.constant 0 : index
    %c0_32 = arith.constant 0 : index
    %39 = vector.load %arg6[%c0_31, %c0_32] : memref<200x128xf32, #tpu.memory_space<vmem>>, vector<200x128xf32>
    tpu.vector_store %arg6[%c0_31, %c0_32], %38 {strides = array<i32>} : memref<200x128xf32, #tpu.memory_space<vmem>>, vector<200x128xf32>,
    return
  }
  func.func @transform_0(%arg0: i32) -> (i32, i32) {
    %c0_i32 = arith.constant 0 : i32
    %c0_i32_0 = arith.constant 0 : i32
    return %arg0, %c0_i32 : i32, i32
  }
  func.func @transform_1(%arg0: i32) -> (i32, i32) {
    %c0_i32 = arith.constant 0 : i32
    %c0_i32_0 = arith.constant 0 : i32
    %c0_i32_1 = arith.constant 0 : i32
    return %c0_i32, %c0_i32_0 : i32, i32
  }
  func.func @transform_2(%arg0: i32) -> (i32, i32) {
    %c0_i32 = arith.constant 0 : i32
    %c0_i32_0 = arith.constant 0 : i32
    %c0_i32_1 = arith.constant 0 : i32
    return %c0_i32, %c0_i32_0 : i32, i32
  }
  func.func @transform_3(%arg0: i32) -> (i32, i32) {
    %c0_i32 = arith.constant 0 : i32
    %c0_i32_0 = arith.constant 0 : i32
    %c0_i32_1 = arith.constant 0 : i32
    return %c0_i32, %c0_i32_0 : i32, i32
  }
  func.func @transform_4(%arg0: i32) -> (i32, i32) {
    %c0_i32 = arith.constant 0 : i32
    %c0_i32_0 = arith.constant 0 : i32
    %c0_i32_1 = arith.constant 0 : i32
    return %c0_i32, %c0_i32_0 : i32, i32
  }
  func.func @transform_5(%arg0: i32) -> (i32, i32) {
    %c0_i32 = arith.constant 0 : i32
    %c0_i32_0 = arith.constant 0 : i32
    return %arg0, %c0_i32 : i32, i32
  }
}

</mosaic_0001>

<llo_original>
// kernel: tpu_custom_call.1
$region0: #{tpu_custom_call.1}
  #allocation0 [shape = 'u32[]', space=smem, size = 0x4, offset = 0x4, fixed_abs, tag = 'smem constant byte address 0x4 - core index']
  #allocation1 [shape = 'u32[144,128]{1,0:T(1,128)}', space=vmem, size = 0x12000, scoped, tag = 'internal scratch']
  #allocation2 [shape = 'f32[200,128]{1,0:T(8,128)}', space=vmem, size = 0x19000, scoped, tag = 'scratch operand']
  %s0 = inlined_call_operand.hbm [shape: f32[392,128], index: 0, kind: input, shape index: {}]
  %s1 = inlined_call_operand.hbm [shape: f32[128,512], index: 1, kind: input, shape index: {}]
  %s2 = inlined_call_operand.hbm [shape: f32[1,512], index: 2, kind: input, shape index: {}]
  %s3 = inlined_call_operand.hbm [shape: f32[512,128], index: 3, kind: input, shape index: {}]
  %s4 = inlined_call_operand.vmem [shape: f32[1,128], index: 4, kind: input, shape index: {}]
  %s5 = inlined_call_operand.hbm [shape: f32[392,128], index: 5, kind: output, shape index: {}]
  %s6 = sld [smem:[#allocation0]]
  $region69: #{tpu_custom_call.1} parent=0
    _
  %s8 = ssub.s32 1, %s6
  %s9 = scalar_select 0, %s8, %s6
  $region1: #{tpu_custom_call.1} parent=0
    #allocation3 [shape = 'u8[204800]{0}', space=vmem, size = 0x32000, scoped, tag = 'input window, operand 0']
    #allocation4 [shape = 's32[2]{0}', space=sflag, size = 0x8, scoped, tag = 'scoped memory for tpu_custom_call.1']
    #allocation5 [shape = 's32[2]{0}', space=sflag, size = 0x8, scoped, tag = 'scoped memory for tpu_custom_call.1']
    #allocation6 [shape = 'u8[262144]{0}', space=vmem, size = 0x40000, scoped, tag = 'input window, operand 1, single buffered']
    #allocation7 [shape = 's32[1]{0}', space=sflag, size = 0x4, scoped, tag = 'scoped memory for tpu_custom_call.1']
    #allocation8 [shape = 'u8[2048]{0}', space=vmem, size = 0x800, scoped, tag = 'input window, operand 2, single buffered']
    #allocation9 [shape = 'u8[262144]{0}', space=vmem, size = 0x40000, scoped, tag = 'input window, operand 3, single buffered']
    #allocation10 [shape = 's32[1]{0}', space=sflag, size = 0x4, scoped, tag = 'scoped memory for tpu_custom_call.1']
    #allocation11 [shape = 'u8[204800]{0}', space=vmem, size = 0x32000, scoped, tag = 'output window, operand 0']
    %10 = vsyncpa [#allocation4], 0
    %s11 = scalar_lea.sflag [#allocation4], 1
    %12 = vsyncpa %s11, 0
    %13 = vsyncpa [#allocation7], 0
    %14 = vsyncpa [#allocation10], 0
    %15 = vsyncpa [#allocation5], 0
    %s16 = scalar_lea.sflag [#allocation5], 1
    %17 = vsyncpa %s16, 0
    loop: start=0, step=1, limit=4
    $region2: #{tpu_custom_call.1} parent=1 // loop_pre_header
      _
    $region3: #{tpu_custom_call.1} parent=1 // loop_header
      %s19 = sphi 0, %s23
      %p20 = scmp.ge.s32.totalorder %s19, 4
      %s29 = sphi 0, %s31
      %s32 = sphi 0, %s29
      %s33 = sphi 0, %s32
      %s49 = sphi 0, %s33
      %s53 = sphi 0, %s53
      %s55 = sphi 0, %s53
      %s56 = sphi 0, %s55
      %s70 = sphi 0, %s56
      %s74 = sphi 0, %s74
      %s76 = sphi 0, %s74
      %s77 = sphi 0, %s76
      %s91 = sphi 0, %s77
      %s95 = sphi 0, %s95
      %s97 = sphi 0, %s95
      %s98 = sphi 0, %s97
      %s112 = sphi 0, %s98
      %s116 = sphi 0, %s116
      %s118 = sphi 0, %s116
      %s119 = sphi 0, %s118
      %s133 = sphi 0, %s119
      %s139 = sphi 0, %s141
      %s142 = sphi 0, %s139
      %s143 = sphi 0, %s142
      %s159 = sphi 0, %s143
    $region4: #{tpu_custom_call.1} parent=1 // loop_header_branch
      %22 = sbr.rel (%p20) target = $region8
    $region5: #{tpu_custom_call.1} parent=1 // loop_body
      %s24 = ssub.s32 %s19, 1
      %s25 = ssub.s32 %s19, 2
      %s26 = sadd.s32 %s19, 1
      %s27 = ssub.s32 %s19, %s26
      %p28 = scmp.eq.s32.totalorder %s27, 0
      %s30 = sadd.s32 %s29, 1
      %s31 = scalar_select %p28, %s29, %s30
      %p34 = pneg %p28
      %p35 = scmp.eq.s32.totalorder %s19, 1
      %p36 = por %p34, %p35
      %p37 = scmp.ne.s32.totalorder %s29, %s32
      %p38 = scmp.eq.s32.totalorder %s19, 0
      %p39 = por %p37, %p38
      %p40 = scmp.ne.s32.totalorder %s29, %s32
      %p41 = scmp.eq.s32.totalorder %s24, 1
      %p42 = por %p40, %p41
      %p43 = scmp.ne.s32.totalorder %s32, %s33
      %p44 = scmp.eq.s32.totalorder %s24, 0
      %p45 = por %p43, %p44
      %p46 = scmp.ne.s32.totalorder %s32, %s33
      %p47 = scmp.eq.s32.totalorder %s25, 1
      %p48 = por %p46, %p47
      %p50 = scmp.ne.s32.totalorder %s33, %s49
      %p51 = scmp.eq.s32.totalorder %s25, 0
      %p52 = por %p50, %p51
      %s54 = sadd.s32 %s53, 1
      %p57 = scmp.eq.s32.totalorder %s19, 1
      %p58 = scmp.ne.s32.totalorder %s53, %s55
      %p59 = scmp.eq.s32.totalorder %s19, 0
      %p60 = por %p58, %p59
      %p61 = scmp.ne.s32.totalorder %s53, %s55
      %p62 = scmp.eq.s32.totalorder %s24, 1
      %p63 = por %p61, %p62
      %p64 = scmp.ne.s32.totalorder %s55, %s56
      %p65 = scmp.eq.s32.totalorder %s24, 0
      %p66 = por %p64, %p65
      %p67 = scmp.ne.s32.totalorder %s55, %s56
      %p68 = scmp.eq.s32.totalorder %s25, 1
      %p69 = por %p67, %p68
      %p71 = scmp.ne.s32.totalorder %s56, %s70
      %p72 = scmp.eq.s32.totalorder %s25, 0
      %p73 = por %p71, %p72
      %s75 = sadd.s32 %s74, 1
      %p78 = scmp.eq.s32.totalorder %s19, 1
      %p79 = scmp.ne.s32.totalorder %s74, %s76
      %p80 = scmp.eq.s32.totalorder %s19, 0
      %p81 = por %p79, %p80
      %p82 = scmp.ne.s32.totalorder %s74, %s76
      %p83 = scmp.eq.s32.totalorder %s24, 1
      %p84 = por %p82, %p83
      %p85 = scmp.ne.s32.totalorder %s76, %s77
      %p86 = scmp.eq.s32.totalorder %s24, 0
      %p87 = por %p85, %p86
      %p88 = scmp.ne.s32.totalorder %s76, %s77
      %p89 = scmp.eq.s32.totalorder %s25, 1
      %p90 = por %p88, %p89
      %p92 = scmp.ne.s32.totalorder %s77, %s91
      %p93 = scmp.eq.s32.totalorder %s25, 0
      %p94 = por %p92, %p93
      %s96 = sadd.s32 %s95, 1
      %p99 = scmp.eq.s32.totalorder %s19, 1
      %p100 = scmp.ne.s32.totalorder %s95, %s97
      %p101 = scmp.eq.s32.totalorder %s19, 0
      %p102 = por %p100, %p101
      %p103 = scmp.ne.s32.totalorder %s95, %s97
      %p104 = scmp.eq.s32.totalorder %s24, 1
      %p105 = por %p103, %p104
      %p106 = scmp.ne.s32.totalorder %s97, %s98
      %p107 = scmp.eq.s32.totalorder %s24, 0
      %p108 = por %p106, %p107
      %p109 = scmp.ne.s32.totalorder %s97, %s98
      %p110 = scmp.eq.s32.totalorder %s25, 1
      %p111 = por %p109, %p110
      %p113 = scmp.ne.s32.totalorder %s98, %s112
      %p114 = scmp.eq.s32.totalorder %s25, 0
      %p115 = por %p113, %p114
      %s117 = sadd.s32 %s116, 1
      %p120 = scmp.eq.s32.totalorder %s19, 1
      %p121 = scmp.ne.s32.totalorder %s116, %s118
      %p122 = scmp.eq.s32.totalorder %s19, 0
      %p123 = por %p121, %p122
      %p124 = scmp.ne.s32.totalorder %s116, %s118
      %p125 = scmp.eq.s32.totalorder %s24, 1
      %p126 = por %p124, %p125
      %p127 = scmp.ne.s32.totalorder %s118, %s119
      %p128 = scmp.eq.s32.totalorder %s24, 0
      %p129 = por %p127, %p128
      %p130 = scmp.ne.s32.totalorder %s118, %s119
      %p131 = scmp.eq.s32.totalorder %s25, 1
      %p132 = por %p130, %p131
      %p134 = scmp.ne.s32.totalorder %s119, %s133
      %p135 = scmp.eq.s32.totalorder %s25, 0
      %p136 = por %p134, %p135
      %s137 = ssub.s32 %s19, %s26
      %p138 = scmp.eq.s32.totalorder %s137, 0
      %s140 = sadd.s32 %s139, 1
      %s141 = scalar_select %p138, %s139, %s140
      %p144 = pneg %p138
      %p145 = scmp.eq.s32.totalorder %s19, 1
      %p146 = por %p144, %p145
      %p147 = scmp.ne.s32.totalorder %s139, %s142
      %p148 = scmp.eq.s32.totalorder %s19, 0
      %p149 = por %p147, %p148
      %p150 = scmp.ne.s32.totalorder %s139, %s142
      %p151 = scmp.eq.s32.totalorder %s24, 1
      %p152 = por %p150, %p151
      %p153 = scmp.ne.s32.totalorder %s142, %s143
      %p154 = scmp.eq.s32.totalorder %s24, 0
      %p155 = por %p153, %p154
      %p156 = scmp.ne.s32.totalorder %s142, %s143
      %p157 = scmp.eq.s32.totalorder %s25, 1
      %p158 = por %p156, %p157
      %p160 = scmp.ne.s32.totalorder %s143, %s159
      %p161 = scmp.eq.s32.totalorder %s25, 0
      %p162 = por %p160, %p161
      %p163 = scmp.le.s32.totalorder 1, %s19
      %p164 = scmp.lt.s32.totalorder %s19, 3
      %p165 = pnand %p163, %p164
      %p166 = pneg %p165
      // Predicated region
      $region9: #{tpu_custom_call.1} parent=5 // pred_check
        _
      $region10: #{tpu_custom_call.1} parent=5 // pred_check_branch
        %168 = sbr.rel (%p165) target = $region12
      $region11: #{tpu_custom_call.1} parent=5 // pred_region
        %s169 = ssub.s32 %s19, 1
        // Predicated region
        $region13: #{tpu_custom_call.1} parent=11 // pred_check
          %p170 = pneg %p66
        $region14: #{tpu_custom_call.1} parent=11 // pred_check_branch
          %172 = sbr.rel (%p170) target = $region16
        $region15: #{tpu_custom_call.1} parent=11 // pred_region
          %s174 = ssub.s32 8192, 8192
          %175 = vsyncadd [#allocation7], %s174
          %s176 = sshll.u32 [#allocation6], 4
          %s177 = int_to_ptr.vmem [resolvable:$true] %s176
          %182 = dma.hbm_to_vmem [thread:$0]  %s1, 8192, %s177, [#allocation7], 512, 512, 32
        $region16: #{tpu_custom_call.1} parent=11 // pred_fallthru
          _
        // Predicated region
        $region17: #{tpu_custom_call.1} parent=11 // pred_check
          %p183 = pneg %p87
        $region18: #{tpu_custom_call.1} parent=11 // pred_check_branch
          %185 = sbr.rel (%p183) target = $region20
        $region19: #{tpu_custom_call.1} parent=11 // pred_region
          %s187 = ssub.s32 64, 64
          %188 = vsyncadd [#allocation7], %s187
          %s190 = sshll.u32 [#allocation8], 4
          %s191 = int_to_ptr.vmem [resolvable:$true] %s190
          %193 = dma.hbm_to_vmem [thread:$0]  %s2, 64, %s191, [#allocation7]
        $region20: #{tpu_custom_call.1} parent=11 // pred_fallthru
          _
        // Predicated region
        $region21: #{tpu_custom_call.1} parent=11 // pred_check
          %p194 = pneg %p108
        $region22: #{tpu_custom_call.1} parent=11 // pred_check_branch
          %196 = sbr.rel (%p194) target = $region24
        $region23: #{tpu_custom_call.1} parent=11 // pred_region
          %s198 = ssub.s32 8192, 8192
          %199 = vsyncadd [#allocation10], %s198
          %s200 = sshll.u32 [#allocation9], 4
          %s201 = int_to_ptr.vmem [resolvable:$true] %s200
          %206 = dma.hbm_to_vmem [thread:$0]  %s3, 8192, %s201, [#allocation10], 128, 128, 8
        $region24: #{tpu_custom_call.1} parent=11 // pred_fallthru
          _
        // Predicated region
        $region25: #{tpu_custom_call.1} parent=11 // pred_check
          %p207 = pneg %p129
        $region26: #{tpu_custom_call.1} parent=11 // pred_check_branch
          %209 = sbr.rel (%p207) target = $region28
        $region27: #{tpu_custom_call.1} parent=11 // pred_region
          _
        $region28: #{tpu_custom_call.1} parent=11 // pred_fallthru
          _
      $region12: #{tpu_custom_call.1} parent=5 // pred_fallthru
        _
      %p210 = scmp.lt.s32.totalorder %s19, 2
      // Predicated region
      $region29: #{tpu_custom_call.1} parent=5 // pred_check
        %p211 = pneg %p210
      $region30: #{tpu_custom_call.1} parent=5 // pred_check_branch
        %213 = sbr.rel (%p211) target = $region32
      $region31: #{tpu_custom_call.1} parent=5 // pred_region
        // Predicated region
        $region33: #{tpu_custom_call.1} parent=31 // pred_check
          %p214 = pneg %p39
        $region34: #{tpu_custom_call.1} parent=31 // pred_check_branch
          %216 = sbr.rel (%p214) target = $region36
        $region35: #{tpu_custom_call.1} parent=31 // pred_region
          %s217 = sand.u32 %s29, 1
          %s218 = scalar_lea.sflag [#allocation4], %s217
          %s219 = sand.u32 %s29, 1
          %s220 = smul.addr %s219, 200
          %s221 = scalar_lea.vmem [#allocation3], %s220
          %s222 = smul.u32 25, %s19
          %s223 = ssub.s32 49, %s222
          %p224 = scmp.lt.s32.totalorder %s223, 25
          %s225 = scalar_select %p224, %s223, 25
          %s226 = smul.u32 128, %s225
          %s228 = ssub.s32 3200, %s226
          %229 = vsyncadd %s218, %s228
          %p230 = scmp.ne.s32.totalorder 0, %s226
          %s231 = smul.addr %s222, 128
          %s232 = scalar_lea.hbm %s0, %s231
          %s233 = smul.u32 8, %s225
          %s234 = sshll.u32 %s221, 4
          %s235 = int_to_ptr.vmem [resolvable:$true] %s234
          %s236 = sshll.u32 %s233, 4
          %240 = dma.hbm_to_vmem [thread:$0]  (%p230), %s232, %s236, %s235, %s218, 128, 128, 8
        $region36: #{tpu_custom_call.1} parent=31 // pred_fallthru
          _
      $region32: #{tpu_custom_call.1} parent=5 // pred_fallthru
        _
      %p241 = scmp.le.s32.totalorder 1, %s19
      %p242 = scmp.lt.s32.totalorder %s19, 3
      %p243 = pnand %p241, %p242
      %p244 = pneg %p243
      // Predicated region
      $region37: #{tpu_custom_call.1} parent=5 // pred_check
        _
      $region38: #{tpu_custom_call.1} parent=5 // pred_check_branch
        %246 = sbr.rel (%p243) target = $region40
      $region39: #{tpu_custom_call.1} parent=5 // pred_region
        %s247 = ssub.s32 %s19, 1
        %s248 = sand.u32 %s32, 1
        %s249 = scalar_lea.sflag [#allocation4], %s248
        %s250 = sand.u32 %s32, 1
        %s251 = smul.addr %s250, 200
        %s252 = scalar_lea.vmem [#allocation3], %s251
        // Predicated region
        $region41: #{tpu_custom_call.1} parent=39 // pred_check
          %p253 = pneg %p45
        $region42: #{tpu_custom_call.1} parent=39 // pred_check_branch
          %255 = sbr.rel (%p253) target = $region44
        $region43: #{tpu_custom_call.1} parent=39 // pred_region
          %256 = dma.done %s249, 3200
        $region44: #{tpu_custom_call.1} parent=39 // pred_fallthru
          _
        // Predicated region
        $region45: #{tpu_custom_call.1} parent=39 // pred_check
          %p257 = pneg %p66
        $region46: #{tpu_custom_call.1} parent=39 // pred_check_branch
          %259 = sbr.rel (%p257) target = $region48
        $region47: #{tpu_custom_call.1} parent=39 // pred_region
          %260 = dma.done [#allocation7], 8192
        $region48: #{tpu_custom_call.1} parent=39 // pred_fallthru
          _
        // Predicated region
        $region49: #{tpu_custom_call.1} parent=39 // pred_check
          %p261 = pneg %p87
        $region50: #{tpu_custom_call.1} parent=39 // pred_check_branch
          %263 = sbr.rel (%p261) target = $region52
        $region51: #{tpu_custom_call.1} parent=39 // pred_region
          %264 = dma.done [#allocation7], 64
        $region52: #{tpu_custom_call.1} parent=39 // pred_fallthru
          _
        // Predicated region
        $region53: #{tpu_custom_call.1} parent=39 // pred_check
          %p265 = pneg %p108
        $region54: #{tpu_custom_call.1} parent=39 // pred_check_branch
          %267 = sbr.rel (%p265) target = $region56
        $region55: #{tpu_custom_call.1} parent=39 // pred_region
          %268 = dma.done [#allocation10], 8192
        $region56: #{tpu_custom_call.1} parent=39 // pred_fallthru
          _
        %s269 = sand.u32 %s32, 1
        %s270 = scalar_lea.sflag [#allocation4], %s269
        %s271 = sand.u32 %s32, 1
        %s272 = smul.addr %s271, 200
        %s273 = scalar_lea.vmem [#allocation3], %s272
        %p274 = pneg %p45
        %p275 = pneg %p42
        %p276 = pneg %p66
        %p277 = pneg %p63
        %p278 = pneg %p87
        %p279 = pneg %p84
        %p280 = pneg %p108
        %p281 = pneg %p105
        %p282 = pneg %p129
        %p283 = pneg %p126
        %p284 = pneg %p155
        %p285 = pneg %p152
        %s286 = sand.u32 %s142, 1
        %s287 = scalar_lea.sflag [#allocation5], %s286
        %s288 = sand.u32 %s142, 1
        %s289 = smul.addr %s288, 200
        %s290 = scalar_lea.vmem [#allocation11], %s289
        %s291 = smul.u32 25, %s24
        %s292 = ssub.s32 49, %s291
        %p293 = scmp.lt.s32.totalorder %s292, 25
        %s294 = scalar_select %p293, %s292, 25
        %s295 = smul.u32 128, %s294
        %s296 = smul.u32 25, %s24
        %s297 = ssub.s32 49, %s296
        %p298 = scmp.lt.s32.totalorder %s297, 25
        %s299 = scalar_select %p298, %s297, 25
        %s300 = smul.u32 128, %s299
        %v301 = vld [vmem:[%s252] sm:$0xff]
        %v302 = vld [vmem:[%s252 + $0x8] sm:$0xff]
        %v303 = vld [vmem:[%s252 + $0x10] sm:$0xff]
        %v304 = vld [vmem:[%s252 + $0x18] sm:$0xff]
        %v305 = vld [vmem:[%s252 + $0x20] sm:$0xff]
        %v306 = vld [vmem:[%s252 + $0x28] sm:$0xff]
        %v307 = vld [vmem:[%s252 + $0x30] sm:$0xff]
        %v308 = vld [vmem:[%s252 + $0x38] sm:$0xff]
        %v309 = vld [vmem:[%s252 + $0x40] sm:$0xff]
        %v310 = vld [vmem:[%s252 + $0x48] sm:$0xff]
        %v311 = vld [vmem:[%s252 + $0x50] sm:$0xff]
        %v312 = vld [vmem:[%s252 + $0x58] sm:$0xff]
        %v313 = vld [vmem:[%s252 + $0x60] sm:$0xff]
        %v314 = vld [vmem:[%s252 + $0x68] sm:$0xff]
        %v315 = vld [vmem:[%s252 + $0x70] sm:$0xff]
        %v316 = vld [vmem:[%s252 + $0x78] sm:$0xff]
        %v317 = vld [vmem:[%s252 + $0x80] sm:$0xff]
        %v318 = vld [vmem:[%s252 + $0x88] sm:$0xff]
        %v319 = vld [vmem:[%s252 + $0x90] sm:$0xff]
        %v320 = vld [vmem:[%s252 + $0x98] sm:$0xff]
        %v321 = vld [vmem:[%s252 + $0xa0] sm:$0xff]
        %v322 = vld [vmem:[%s252 + $0xa8] sm:$0xff]
        %v323 = vld [vmem:[%s252 + $0xb0] sm:$0xff]
        %v324 = vld [vmem:[%s252 + $0xb8] sm:$0xff]
        %v325 = vld [vmem:[%s252 + $0xc0] sm:$0xff]
        %v326 = vld [vmem:[#allocation6] sm:$0xff]
        %v327 = vld [vmem:[#allocation6 + $0x8] sm:$0xff]
        %v328 = vld [vmem:[#allocation6 + $0x20] sm:$0xff]
        %v329 = vld [vmem:[#allocation6 + $0x28] sm:$0xff]
        %v330 = vld [vmem:[#allocation6 + $0x40] sm:$0xff]
        %v331 = vld [vmem:[#allocation6 + $0x48] sm:$0xff]
        %v332 = vld [vmem:[#allocation6 + $0x60] sm:$0xff]
        %v333 = vld [vmem:[#allocation6 + $0x68] sm:$0xff]
        %v334 = vld [vmem:[#allocation6 + $0x80] sm:$0xff]
        %v335 = vld [vmem:[#allocation6 + $0x88] sm:$0xff]
        %v336 = vld [vmem:[#allocation6 + $0xa0] sm:$0xff]
        %v337 = vld [vmem:[#allocation6 + $0xa8] sm:$0xff]
        %v338 = vld [vmem:[#allocation6 + $0xc0] sm:$0xff]
        %v339 = vld [vmem:[#allocation6 + $0xc8] sm:$0xff]
        %v340 = vld [vmem:[#allocation6 + $0xe0] sm:$0xff]
        %v341 = vld [vmem:[#allocation6 + $0xe8] sm:$0xff]
        %v342 = vld [vmem:[#allocation6 + $0x100] sm:$0xff]
        %v343 = vld [vmem:[#allocation6 + $0x108] sm:$0xff]
        %v344 = vld [vmem:[#allocation6 + $0x120] sm:$0xff]
        %v345 = vld [vmem:[#allocation6 + $0x128] sm:$0xff]
        %v346 = vld [vmem:[#allocation6 + $0x140] sm:$0xff]
        %v347 = vld [vmem:[#allocation6 + $0x148] sm:$0xff]
        %v348 = vld [vmem:[#allocation6 + $0x160] sm:$0xff]
        %v349 = vld [vmem:[#allocation6 + $0x168] sm:$0xff]
        %v350 = vld [vmem:[#allocation6 + $0x180] sm:$0xff]
        %v351 = vld [vmem:[#allocation6 + $0x188] sm:$0xff]
        %v352 = vld [vmem:[#allocation6 + $0x1a0] sm:$0xff]
        %v353 = vld [vmem:[#allocation6 + $0x1a8] sm:$0xff]
        %v354 = vld [vmem:[#allocation6 + $0x1c0] sm:$0xff]
        %v355 = vld [vmem:[#allocation6 + $0x1c8] sm:$0xff]
        %v356 = vld [vmem:[#allocation6 + $0x1e0] sm:$0xff]
        %v357 = vld [vmem:[#allocation6 + $0x1e8] sm:$0xff]
        %v358 = vld [vmem:[#allocation8] sm:$0x3]
        %v360 = vlaneseq
        %v361 = vshrl.u32 %v360, 7
        %v362 = vsub.s32 0, %v361
        %v363 = vrot.slane %v358, %v362
        %v364 = vlaneseq
        %v365 = vshrl.u32 %v364, 7
        %v366 = vsub.s32 1, %v365
        %v367 = vrot.slane %v358, %v366
        %370 = vmatprep.subr.mxu0 %v357
        %371 = vmatpush1.msra.mxu0 %v356
        %372 = vmatprep.subr.mxu0 %v355
        %373 = vmatpush1.msra.mxu0 %v354
        %374 = vmatprep.subr.mxu0 %v353
        %375 = vmatpush1.msra.mxu0 %v352
        %376 = vmatprep.subr.mxu0 %v351
        %377 = vmatpush1.msra.mxu0 %v350
        %378 = vmatprep.subr.mxu0 %v349
        %379 = vmatpush1.msra.mxu0 %v348
        %380 = vmatprep.subr.mxu0 %v347
        %381 = vmatpush1.msra.mxu0 %v346
        %382 = vmatprep.subr.mxu0 %v345
        %383 = vmatpush1.msra.mxu0 %v344
        %384 = vmatprep.subr.mxu0 %v343
        %385 = vmatpush1.msra.mxu0 %v342
        %386 = vmatprep.subr.mxu0 %v341
        %387 = vmatpush1.msra.mxu0 %v340
        %388 = vmatprep.subr.mxu0 %v339
        %389 = vmatpush1.msra.mxu0 %v338
        %390 = vmatprep.subr.mxu0 %v337
        %391 = vmatpush1.msra.mxu0 %v336
        %392 = vmatprep.subr.mxu0 %v335
        %393 = vmatpush1.msra.mxu0 %v334
        %394 = vmatprep.subr.mxu0 %v333
        %395 = vmatpush1.msra.mxu0 %v332
        %396 = vmatprep.subr.mxu0 %v331
        %397 = vmatpush1.msra.mxu0 %v330
        %398 = vmatprep.subr.mxu0 %v329
        %399 = vmatpush1.msra.mxu0 %v328
        %400 = vmatprep.subr.mxu0 %v327
        %401 = vmatpush1.msra.mxu0 %v326
        %402 = vmatprep.subr.mxu0 0.0
        %403 = vmatpush2.msra.mxu0 0.0
        %404 = vmatprep.subr.mxu0 0.0
        %405 = vmatpush2.msra.mxu0 0.0
        %406 = vmatprep.subr.mxu0 0.0
        %407 = vmatpush2.msra.mxu0 0.0
        %408 = vmatprep.subr.mxu0 0.0
        %409 = vmatpush2.msra.mxu0 0.0
        %410 = vmatprep.subr.mxu0 0.0
        %411 = vmatpush2.msra.mxu0 0.0
        %412 = vmatprep.subr.mxu0 0.0
        %413 = vmatpush2.msra.mxu0 0.0
        %414 = vmatprep.subr.mxu0 0.0
        %415 = vmatpush2.msra.mxu0 0.0
        %416 = vmatprep.subr.mxu0 0.0
        %417 = vmatpush2.msra.mxu0 0.0
        %418 = vmatprep.subr.mxu0 0.0
        %419 = vmatpush2.msra.mxu0 0.0
        %420 = vmatprep.subr.mxu0 0.0
        %421 = vmatpush2.msra.mxu0 0.0
        %422 = vmatprep.subr.mxu0 0.0
        %423 = vmatpush2.msra.mxu0 0.0
        %424 = vmatprep.subr.mxu0 0.0
        %425 = vmatpush2.msra.mxu0 0.0
        %426 = vmatprep.subr.mxu0 0.0
        %427 = vmatpush2.msra.mxu0 0.0
        %428 = vmatprep.subr.mxu0 0.0
        %429 = vmatpush2.msra.mxu0 0.0
        %430 = vmatprep.subr.mxu0 0.0
        %431 = vmatpush2.msra.mxu0 0.0
        %432 = vmatprep.subr.mxu0 0.0
        %433 = vmatpush2.msra.mxu0 0.0
        %434 = vmatprep.mubr.f32.mxu0 0.0
        %435 = vmatmul.mubr.f32.gmra.mxu0 %v301
        %v436 = vpop.f32.mrf.mxu0
        %v437 = vadd.f32 %v363, %v436
        %v438 = vpop.f32.mrf.mxu0
        %v439 = vadd.f32 %v367, %v438
        %440 = vmatprep.mubr.f32.mxu0 0.0
        %441 = vmatmul.mubr.f32.gmra.mxu0 %v302
        %v442 = vpop.f32.mrf.mxu0
        %v443 = vadd.f32 %v363, %v442
        %v444 = vpop.f32.mrf.mxu0
        %v445 = vadd.f32 %v367, %v444
        %446 = vmatprep.mubr.f32.mxu0 0.0
        %447 = vmatmul.mubr.f32.gmra.mxu0 %v303
        %v448 = vpop.f32.mrf.mxu0
        %v449 = vadd.f32 %v363, %v448
        %v450 = vpop.f32.mrf.mxu0
        %v451 = vadd.f32 %v367, %v450
        %452 = vmatprep.mubr.f32.mxu0 0.0
        %453 = vmatmul.mubr.f32.gmra.mxu0 %v304
        %v454 = vpop.f32.mrf.mxu0
        %v455 = vadd.f32 %v363, %v454
        %v456 = vpop.f32.mrf.mxu0
        %v457 = vadd.f32 %v367, %v456
        %458 = vmatprep.mubr.f32.mxu0 0.0
        %459 = vmatmul.mubr.f32.gmra.mxu0 %v305
        %v460 = vpop.f32.mrf.mxu0
        %v461 = vadd.f32 %v363, %v460
        %v462 = vpop.f32.mrf.mxu0
        %v463 = vadd.f32 %v367, %v462
        %464 = vmatprep.mubr.f32.mxu0 0.0
        %465 = vmatmul.mubr.f32.gmra.mxu0 %v306
        %v466 = vpop.f32.mrf.mxu0
        %v467 = vadd.f32 %v363, %v466
        %v468 = vpop.f32.mrf.mxu0
        %v469 = vadd.f32 %v367, %v468
        %470 = vmatprep.mubr.f32.mxu0 0.0
        %471 = vmatmul.mubr.f32.gmra.mxu0 %v307
        %v472 = vpop.f32.mrf.mxu0
        %v473 = vadd.f32 %v363, %v472
        %v474 = vpop.f32.mrf.mxu0
        %v475 = vadd.f32 %v367, %v474
        %476 = vmatprep.mubr.f32.mxu0 0.0
        %477 = vmatmul.mubr.f32.gmra.mxu0 %v308
        %v478 = vpop.f32.mrf.mxu0
        %v479 = vadd.f32 %v363, %v478
        %v480 = vpop.f32.mrf.mxu0
        %v481 = vadd.f32 %v367, %v480
        %482 = vmatprep.mubr.f32.mxu0 0.0
        %483 = vmatmul.mubr.f32.gmra.mxu0 %v309
        %v484 = vpop.f32.mrf.mxu0
        %v485 = vadd.f32 %v363, %v484
        %v486 = vpop.f32.mrf.mxu0
        %v487 = vadd.f32 %v367, %v486
        %488 = vmatprep.mubr.f32.mxu0 0.0
        %489 = vmatmul.mubr.f32.gmra.mxu0 %v310
        %v490 = vpop.f32.mrf.mxu0
        %v491 = vadd.f32 %v363, %v490
        %v492 = vpop.f32.mrf.mxu0
        %v493 = vadd.f32 %v367, %v492
        %494 = vmatprep.mubr.f32.mxu0 0.0
        %495 = vmatmul.mubr.f32.gmra.mxu0 %v311
        %v496 = vpop.f32.mrf.mxu0
        %v497 = vadd.f32 %v363, %v496
        %v498 = vpop.f32.mrf.mxu0
        %v499 = vadd.f32 %v367, %v498
        %500 = vmatprep.mubr.f32.mxu0 0.0
        %501 = vmatmul.mubr.f32.gmra.mxu0 %v312
        %v502 = vpop.f32.mrf.mxu0
        %v503 = vadd.f32 %v363, %v502
        %v504 = vpop.f32.mrf.mxu0
        %v505 = vadd.f32 %v367, %v504
        %506 = vmatprep.mubr.f32.mxu0 0.0
        %507 = vmatmul.mubr.f32.gmra.mxu0 %v313
        %v508 = vpop.f32.mrf.mxu0
        %v509 = vadd.f32 %v363, %v508
        %v510 = vpop.f32.mrf.mxu0
        %v511 = vadd.f32 %v367, %v510
        %512 = vmatprep.mubr.f32.mxu0 0.0
        %513 = vmatmul.mubr.f32.gmra.mxu0 %v314
        %v514 = vpop.f32.mrf.mxu0
        %v515 = vadd.f32 %v363, %v514
        %v516 = vpop.f32.mrf.mxu0
        %v517 = vadd.f32 %v367, %v516
        %518 = vmatprep.mubr.f32.mxu0 0.0
        %519 = vmatmul.mubr.f32.gmra.mxu0 %v315
        %v520 = vpop.f32.mrf.mxu0
        %v521 = vadd.f32 %v363, %v520
        %v522 = vpop.f32.mrf.mxu0
        %v523 = vadd.f32 %v367, %v522
        %524 = vmatprep.mubr.f32.mxu0 0.0
        %525 = vmatmul.mubr.f32.gmra.mxu0 %v316
        %v526 = vpop.f32.mrf.mxu0
        %v527 = vadd.f32 %v363, %v526
        %v528 = vpop.f32.mrf.mxu0
        %v529 = vadd.f32 %v367, %v528
        %530 = vmatprep.mubr.f32.mxu0 0.0
        %531 = vmatmul.mubr.f32.gmra.mxu0 %v317
        %v532 = vpop.f32.mrf.mxu0
        %v533 = vadd.f32 %v363, %v532
        %v534 = vpop.f32.mrf.mxu0
        %v535 = vadd.f32 %v367, %v534
        %536 = vmatprep.mubr.f32.mxu0 0.0
        %537 = vmatmul.mubr.f32.gmra.mxu0 %v318
        %v538 = vpop.f32.mrf.mxu0
        %v539 = vadd.f32 %v363, %v538
        %v540 = vpop.f32.mrf.mxu0
        %v541 = vadd.f32 %v367, %v540
        %542 = vmatprep.mubr.f32.mxu0 0.0
        %543 = vmatmul.mubr.f32.gmra.mxu0 %v319
        %v544 = vpop.f32.mrf.mxu0
        %v545 = vadd.f32 %v363, %v544
        %v546 = vpop.f32.mrf.mxu0
        %v547 = vadd.f32 %v367, %v546
        %548 = vmatprep.mubr.f32.mxu0 0.0
        %549 = vmatmul.mubr.f32.gmra.mxu0 %v320
        %v550 = vpop.f32.mrf.mxu0
        %v551 = vadd.f32 %v363, %v550
        %v552 = vpop.f32.mrf.mxu0
        %v553 = vadd.f32 %v367, %v552
        %554 = vmatprep.mubr.f32.mxu0 0.0
        %555 = vmatmul.mubr.f32.gmra.mxu0 %v321
        %v556 = vpop.f32.mrf.mxu0
        %v557 = vadd.f32 %v363, %v556
        %v558 = vpop.f32.mrf.mxu0
        %v559 = vadd.f32 %v367, %v558
        %560 = vmatprep.mubr.f32.mxu0 0.0
        %561 = vmatmul.mubr.f32.gmra.mxu0 %v322
        %v562 = vpop.f32.mrf.mxu0
        %v563 = vadd.f32 %v363, %v562
        %v564 = vpop.f32.mrf.mxu0
        %v565 = vadd.f32 %v367, %v564
        %566 = vmatprep.mubr.f32.mxu0 0.0
        %567 = vmatmul.mubr.f32.gmra.mxu0 %v323
        %v568 = vpop.f32.mrf.mxu0
        %v569 = vadd.f32 %v363, %v568
        %v570 = vpop.f32.mrf.mxu0
        %v571 = vadd.f32 %v367, %v570
        %572 = vmatprep.mubr.f32.mxu0 0.0
        %573 = vmatmul.mubr.f32.gmra.mxu0 %v324
        %v574 = vpop.f32.mrf.mxu0
        %v575 = vadd.f32 %v363, %v574
        %v576 = vpop.f32.mrf.mxu0
        %v577 = vadd.f32 %v367, %v576
        %578 = vmatprep.mubr.f32.mxu0 0.0
        %579 = vmatmul.mubr.f32.gmra.mxu0 %v325
        %v580 = vpop.f32.mrf.mxu0
        %v581 = vadd.f32 %v363, %v580
        %v582 = vpop.f32.mrf.mxu0
        %v583 = vadd.f32 %v367, %v582
        %584 = vdwg.mxu0
        %v585 = vmul.f32 %v437, 0.5
        %v586 = vmul.f32 %v439, 0.5
        %v587 = vmul.f32 %v443, 0.5
        %v588 = vmul.f32 %v445, 0.5
        %v589 = vmul.f32 %v449, 0.5
        %v590 = vmul.f32 %v451, 0.5
        %v591 = vmul.f32 %v455, 0.5
        %v592 = vmul.f32 %v457, 0.5
        %v593 = vmul.f32 %v461, 0.5
        %v594 = vmul.f32 %v463, 0.5
        %v595 = vmul.f32 %v467, 0.5
        %v596 = vmul.f32 %v469, 0.5
        %v597 = vmul.f32 %v473, 0.5
        %v598 = vmul.f32 %v475, 0.5
        %v599 = vmul.f32 %v479, 0.5
        %v600 = vmul.f32 %v481, 0.5
        %v601 = vmul.f32 %v485, 0.5
        %v602 = vmul.f32 %v487, 0.5
        %v603 = vmul.f32 %v491, 0.5
        %v604 = vmul.f32 %v493, 0.5
        %v605 = vmul.f32 %v497, 0.5
        %v606 = vmul.f32 %v499, 0.5
        %v607 = vmul.f32 %v503, 0.5
        %v608 = vmul.f32 %v505, 0.5
        %v609 = vmul.f32 %v509, 0.5
        %v610 = vmul.f32 %v511, 0.5
        %v611 = vmul.f32 %v515, 0.5
        %v612 = vmul.f32 %v517, 0.5
        %v613 = vmul.f32 %v521, 0.5
        %v614 = vmul.f32 %v523, 0.5
        %v615 = vmul.f32 %v527, 0.5
        %v616 = vmul.f32 %v529, 0.5
        %v617 = vmul.f32 %v533, 0.5
        %v618 = vmul.f32 %v535, 0.5
        %v619 = vmul.f32 %v539, 0.5
        %v620 = vmul.f32 %v541, 0.5
        %v621 = vmul.f32 %v545, 0.5
        %v622 = vmul.f32 %v547, 0.5
        %v623 = vmul.f32 %v551, 0.5
        %v624 = vmul.f32 %v553, 0.5
        %v625 = vmul.f32 %v557, 0.5
        %v626 = vmul.f32 %v559, 0.5
        %v627 = vmul.f32 %v563, 0.5
        %v628 = vmul.f32 %v565, 0.5
        %v629 = vmul.f32 %v569, 0.5
        %v630 = vmul.f32 %v571, 0.5
        %v631 = vmul.f32 %v575, 0.5
        %v632 = vmul.f32 %v577, 0.5
        %v633 = vmul.f32 %v581, 0.5
        %v634 = vmul.f32 %v583, 0.5
        %v635 = vmul.f32 %v437, 0.70710677
        %v636 = vmul.f32 %v439, 0.70710677
        %v637 = vmul.f32 %v443, 0.70710677
        %v638 = vmul.f32 %v445, 0.70710677
        %v639 = vmul.f32 %v449, 0.70710677
        %v640 = vmul.f32 %v451, 0.70710677
        %v641 = vmul.f32 %v455, 0.70710677
        %v642 = vmul.f32 %v457, 0.70710677
        %v643 = vmul.f32 %v461, 0.70710677
        %v644 = vmul.f32 %v463, 0.70710677
        %v645 = vmul.f32 %v467, 0.70710677
        %v646 = vmul.f32 %v469, 0.70710677
        %v647 = vmul.f32 %v473, 0.70710677
        %v648 = vmul.f32 %v475, 0.70710677
        %v649 = vmul.f32 %v479, 0.70710677
        %v650 = vmul.f32 %v481, 0.70710677
        %v651 = vmul.f32 %v485, 0.70710677
        %v652 = vmul.f32 %v487, 0.70710677
        %v653 = vmul.f32 %v491, 0.70710677
        %v654 = vmul.f32 %v493, 0.70710677
        %v655 = vmul.f32 %v497, 0.70710677
        %v656 = vmul.f32 %v499, 0.70710677
        %v657 = vmul.f32 %v503, 0.70710677
        %v658 = vmul.f32 %v505, 0.70710677
        %v659 = vmul.f32 %v509, 0.70710677
        %v660 = vmul.f32 %v511, 0.70710677
        %v661 = vmul.f32 %v515, 0.70710677
        %v662 = vmul.f32 %v517, 0.70710677
        %v663 = vmul.f32 %v521, 0.70710677
        %v664 = vmul.f32 %v523, 0.70710677
        %v665 = vmul.f32 %v527, 0.70710677
        %v666 = vmul.f32 %v529, 0.70710677
        %v667 = vmul.f32 %v533, 0.70710677
        %v668 = vmul.f32 %v535, 0.70710677
        %v669 = vmul.f32 %v539, 0.70710677
        %v670 = vmul.f32 %v541, 0.70710677
        %v671 = vmul.f32 %v545, 0.70710677
        %v672 = vmul.f32 %v547, 0.70710677
        %v673 = vmul.f32 %v551, 0.70710677
        %v674 = vmul.f32 %v553, 0.70710677
        %v675 = vmul.f32 %v557, 0.70710677
        %v676 = vmul.f32 %v559, 0.70710677
        %v677 = vmul.f32 %v563, 0.70710677
        %v678 = vmul.f32 %v565, 0.70710677
        %v679 = vmul.f32 %v569, 0.70710677
        %v680 = vmul.f32 %v571, 0.70710677
        %v681 = vmul.f32 %v575, 0.70710677
        %v682 = vmul.f32 %v577, 0.70710677
        %v683 = vmul.f32 %v581, 0.70710677
        %v684 = vmul.f32 %v583, 0.70710677
        %v685 = verf.f32.pop %v635
        %v686 = verf.f32.pop %v636
        %v687 = verf.f32.pop %v637
        %v688 = verf.f32.pop %v638
        %v689 = verf.f32.pop %v639
        %v690 = verf.f32.pop %v640
        %v691 = verf.f32.pop %v641
        %v692 = verf.f32.pop %v642
        %v693 = verf.f32.pop %v643
        %v694 = verf.f32.pop %v644
        %v695 = verf.f32.pop %v645
        %v696 = verf.f32.pop %v646
        %v697 = verf.f32.pop %v647
        %v698 = verf.f32.pop %v648
        %v699 = verf.f32.pop %v649
        %v700 = verf.f32.pop %v650
        %v701 = verf.f32.pop %v651
        %v702 = verf.f32.pop %v652
        %v703 = verf.f32.pop %v653
        %v704 = verf.f32.pop %v654
        %v705 = verf.f32.pop %v655
        %v706 = verf.f32.pop %v656
        %v707 = verf.f32.pop %v657
        %v708 = verf.f32.pop %v658
        %v709 = verf.f32.pop %v659
        %v710 = verf.f32.pop %v660
        %v711 = verf.f32.pop %v661
        %v712 = verf.f32.pop %v662
        %v713 = verf.f32.pop %v663
        %v714 = verf.f32.pop %v664
        %v715 = verf.f32.pop %v665
        %v716 = verf.f32.pop %v666
        %v717 = verf.f32.pop %v667
        %v718 = verf.f32.pop %v668
        %v719 = verf.f32.pop %v669
        %v720 = verf.f32.pop %v670
        %v721 = verf.f32.pop %v671
        %v722 = verf.f32.pop %v672
        %v723 = verf.f32.pop %v673
        %v724 = verf.f32.pop %v674
        %v725 = verf.f32.pop %v675
        %v726 = verf.f32.pop %v676
        %v727 = verf.f32.pop %v677
        %v728 = verf.f32.pop %v678
        %v729 = verf.f32.pop %v679
        %v730 = verf.f32.pop %v680
        %v731 = verf.f32.pop %v681
        %v732 = verf.f32.pop %v682
        %v733 = verf.f32.pop %v683
        %v734 = verf.f32.pop %v684
        %v735 = vadd.f32 %v685, 1.0
        %v736 = vadd.f32 %v686, 1.0
        %v737 = vadd.f32 %v687, 1.0
        %v738 = vadd.f32 %v688, 1.0
        %v739 = vadd.f32 %v689, 1.0
        %v740 = vadd.f32 %v690, 1.0
        %v741 = vadd.f32 %v691, 1.0
        %v742 = vadd.f32 %v692, 1.0
        %v743 = vadd.f32 %v693, 1.0
        %v744 = vadd.f32 %v694, 1.0
        %v745 = vadd.f32 %v695, 1.0
        %v746 = vadd.f32 %v696, 1.0
        %v747 = vadd.f32 %v697, 1.0
        %v748 = vadd.f32 %v698, 1.0
        %v749 = vadd.f32 %v699, 1.0
        %v750 = vadd.f32 %v700, 1.0
        %v751 = vadd.f32 %v701, 1.0
        %v752 = vadd.f32 %v702, 1.0
        %v753 = vadd.f32 %v703, 1.0
        %v754 = vadd.f32 %v704, 1.0
        %v755 = vadd.f32 %v705, 1.0
        %v756 = vadd.f32 %v706, 1.0
        %v757 = vadd.f32 %v707, 1.0
        %v758 = vadd.f32 %v708, 1.0
        %v759 = vadd.f32 %v709, 1.0
        %v760 = vadd.f32 %v710, 1.0
        %v761 = vadd.f32 %v711, 1.0
        %v762 = vadd.f32 %v712, 1.0
        %v763 = vadd.f32 %v713, 1.0
        %v764 = vadd.f32 %v714, 1.0
        %v765 = vadd.f32 %v715, 1.0
        %v766 = vadd.f32 %v716, 1.0
        %v767 = vadd.f32 %v717, 1.0
        %v768 = vadd.f32 %v718, 1.0
        %v769 = vadd.f32 %v719, 1.0
        %v770 = vadd.f32 %v720, 1.0
        %v771 = vadd.f32 %v721, 1.0
        %v772 = vadd.f32 %v722, 1.0
        %v773 = vadd.f32 %v723, 1.0
        %v774 = vadd.f32 %v724, 1.0
        %v775 = vadd.f32 %v725, 1.0
        %v776 = vadd.f32 %v726, 1.0
        %v777 = vadd.f32 %v727, 1.0
        %v778 = vadd.f32 %v728, 1.0
        %v779 = vadd.f32 %v729, 1.0
        %v780 = vadd.f32 %v730, 1.0
        %v781 = vadd.f32 %v731, 1.0
        %v782 = vadd.f32 %v732, 1.0
        %v783 = vadd.f32 %v733, 1.0
        %v784 = vadd.f32 %v734, 1.0
        %v785 = vmul.f32 %v585, %v735
        %v786 = vmul.f32 %v586, %v736
        %v787 = vmul.f32 %v587, %v737
        %v788 = vmul.f32 %v588, %v738
        %v789 = vmul.f32 %v589, %v739
        %v790 = vmul.f32 %v590, %v740
        %v791 = vmul.f32 %v591, %v741
        %v792 = vmul.f32 %v592, %v742
        %v793 = vmul.f32 %v593, %v743
        %v794 = vmul.f32 %v594, %v744
        %v795 = vmul.f32 %v595, %v745
        %v796 = vmul.f32 %v596, %v746
        %v797 = vmul.f32 %v597, %v747
        %v798 = vmul.f32 %v598, %v748
        %v799 = vmul.f32 %v599, %v749
        %v800 = vmul.f32 %v600, %v750
        %v801 = vmul.f32 %v601, %v751
        %v802 = vmul.f32 %v602, %v752
        %v803 = vmul.f32 %v603, %v753
        %v804 = vmul.f32 %v604, %v754
        %v805 = vmul.f32 %v605, %v755
        %v806 = vmul.f32 %v606, %v756
        %v807 = vmul.f32 %v607, %v757
        %v808 = vmul.f32 %v608, %v758
        %v809 = vmul.f32 %v609, %v759
        %v810 = vmul.f32 %v610, %v760
        %v811 = vmul.f32 %v611, %v761
        %v812 = vmul.f32 %v612, %v762
        %v813 = vmul.f32 %v613, %v763
        %v814 = vmul.f32 %v614, %v764
        %v815 = vmul.f32 %v615, %v765
        %v816 = vmul.f32 %v616, %v766
        %v817 = vmul.f32 %v617, %v767
        %v818 = vmul.f32 %v618, %v768
        %v819 = vmul.f32 %v619, %v769
        %v820 = vmul.f32 %v620, %v770
        %v821 = vmul.f32 %v621, %v771
        %v822 = vmul.f32 %v622, %v772
        %v823 = vmul.f32 %v623, %v773
        %v824 = vmul.f32 %v624, %v774
        %v825 = vmul.f32 %v625, %v775
        %v826 = vmul.f32 %v626, %v776
        %v827 = vmul.f32 %v627, %v777
        %v828 = vmul.f32 %v628, %v778
        %v829 = vmul.f32 %v629, %v779
        %v830 = vmul.f32 %v630, %v780
        %v831 = vmul.f32 %v631, %v781
        %v832 = vmul.f32 %v632, %v782
        %v833 = vmul.f32 %v633, %v783
        %v834 = vmul.f32 %v634, %v784
        %v835 = vld [vmem:[#allocation9] sm:$0xff]
        %v836 = vld [vmem:[#allocation9 + $0x8] sm:$0xff]
        %v837 = vld [vmem:[#allocation9 + $0x10] sm:$0xff]
        %v838 = vld [vmem:[#allocation9 + $0x18] sm:$0xff]
        %v839 = vld [vmem:[#allocation9 + $0x20] sm:$0xff]
        %v840 = vld [vmem:[#allocation9 + $0x28] sm:$0xff]
        %v841 = vld [vmem:[#allocation9 + $0x30] sm:$0xff]
        %v842 = vld [vmem:[#allocation9 + $0x38] sm:$0xff]
        %v843 = vld [vmem:[#allocation9 + $0x40] sm:$0xff]
        %v844 = vld [vmem:[#allocation9 + $0x48] sm:$0xff]
        %v845 = vld [vmem:[#allocation9 + $0x50] sm:$0xff]
        %v846 = vld [vmem:[#allocation9 + $0x58] sm:$0xff]
        %v847 = vld [vmem:[#allocation9 + $0x60] sm:$0xff]
        %v848 = vld [vmem:[#allocation9 + $0x68] sm:$0xff]
        %v849 = vld [vmem:[#allocation9 + $0x70] sm:$0xff]
        %v850 = vld [vmem:[#allocation9 + $0x78] sm:$0xff]
        %v851 = vld [vmem:[#allocation9 + $0x80] sm:$0xff]
        %v852 = vld [vmem:[#allocation9 + $0x88] sm:$0xff]
        %v853 = vld [vmem:[#allocation9 + $0x90] sm:$0xff]
        %v854 = vld [vmem:[#allocation9 + $0x98] sm:$0xff]
        %v855 = vld [vmem:[#allocation9 + $0xa0] sm:$0xff]
        %v856 = vld [vmem:[#allocation9 + $0xa8] sm:$0xff]
        %v857 = vld [vmem:[#allocation9 + $0xb0] sm:$0xff]
        %v858 = vld [vmem:[#allocation9 + $0xb8] sm:$0xff]
        %v859 = vld [vmem:[#allocation9 + $0xc0] sm:$0xff]
        %v860 = vld [vmem:[#allocation9 + $0xc8] sm:$0xff]
        %v861 = vld [vmem:[#allocation9 + $0xd0] sm:$0xff]
        %v862 = vld [vmem:[#allocation9 + $0xd8] sm:$0xff]
        %v863 = vld [vmem:[#allocation9 + $0xe0] sm:$0xff]
        %v864 = vld [vmem:[#allocation9 + $0xe8] sm:$0xff]
        %v865 = vld [vmem:[#allocation9 + $0xf0] sm:$0xff]
        %v866 = vld [vmem:[#allocation9 + $0xf8] sm:$0xff]
        %867 = vmatprep.subr.mxu0 0.0
        %868 = vmatpush1.msra.mxu0 %v850
        %869 = vmatprep.subr.mxu0 0.0
        %870 = vmatpush1.msra.mxu0 %v849
        %871 = vmatprep.subr.mxu0 0.0
        %872 = vmatpush1.msra.mxu0 %v848
        %873 = vmatprep.subr.mxu0 0.0
        %874 = vmatpush1.msra.mxu0 %v847
        %875 = vmatprep.subr.mxu0 0.0
        %876 = vmatpush1.msra.mxu0 %v846
        %877 = vmatprep.subr.mxu0 0.0
        %878 = vmatpush1.msra.mxu0 %v845
        %879 = vmatprep.subr.mxu0 0.0
        %880 = vmatpush1.msra.mxu0 %v844
        %881 = vmatprep.subr.mxu0 0.0
        %882 = vmatpush1.msra.mxu0 %v843
        %883 = vmatprep.subr.mxu0 0.0
        %884 = vmatpush1.msra.mxu0 %v842
        %885 = vmatprep.subr.mxu0 0.0
        %886 = vmatpush1.msra.mxu0 %v841
        %887 = vmatprep.subr.mxu0 0.0
        %888 = vmatpush1.msra.mxu0 %v840
        %889 = vmatprep.subr.mxu0 0.0
        %890 = vmatpush1.msra.mxu0 %v839
        %891 = vmatprep.subr.mxu0 0.0
        %892 = vmatpush1.msra.mxu0 %v838
        %893 = vmatprep.subr.mxu0 0.0
        %894 = vmatpush1.msra.mxu0 %v837
        %895 = vmatprep.subr.mxu0 0.0
        %896 = vmatpush1.msra.mxu0 %v836
        %897 = vmatprep.subr.mxu0 0.0
        %898 = vmatpush1.msra.mxu0 %v835
        %899 = vmatprep.subr.mxu0 0.0
        %900 = vmatpush2.msra.mxu0 %v866
        %901 = vmatprep.subr.mxu0 0.0
        %902 = vmatpush2.msra.mxu0 %v865
        %903 = vmatprep.subr.mxu0 0.0
        %904 = vmatpush2.msra.mxu0 %v864
        %905 = vmatprep.subr.mxu0 0.0
        %906 = vmatpush2.msra.mxu0 %v863
        %907 = vmatprep.subr.mxu0 0.0
        %908 = vmatpush2.msra.mxu0 %v862
        %909 = vmatprep.subr.mxu0 0.0
        %910 = vmatpush2.msra.mxu0 %v861
        %911 = vmatprep.subr.mxu0 0.0
        %912 = vmatpush2.msra.mxu0 %v860
        %913 = vmatprep.subr.mxu0 0.0
        %914 = vmatpush2.msra.mxu0 %v859
        %915 = vmatprep.subr.mxu0 0.0
        %916 = vmatpush2.msra.mxu0 %v858
        %917 = vmatprep.subr.mxu0 0.0
        %918 = vmatpush2.msra.mxu0 %v857
        %919 = vmatprep.subr.mxu0 0.0
        %920 = vmatpush2.msra.mxu0 %v856
        %921 = vmatprep.subr.mxu0 0.0
        %922 = vmatpush2.msra.mxu0 %v855
        %923 = vmatprep.subr.mxu0 0.0
        %924 = vmatpush2.msra.mxu0 %v854
        %925 = vmatprep.subr.mxu0 0.0
        %926 = vmatpush2.msra.mxu0 %v853
        %927 = vmatprep.subr.mxu0 0.0
        %928 = vmatpush2.msra.mxu0 %v852
        %929 = vmatprep.subr.mxu0 0.0
        %930 = vmatpush2.msra.mxu0 %v851
        %931 = vmatprep.mubr.f32.mxu0 %v786
        %932 = vmatmul.mubr.f32.gmra.mxu0 %v785
        %v933 = vpop.f32.mrf.mxu0
        %v934 = vadd.f32 0.0, %v933
        %v935 = vpop.f32.mrf.mxu0
        %936 = vmatprep.mubr.f32.mxu0 %v788
        %937 = vmatmul.mubr.f32.gmra.mxu0 %v787
        %v938 = vpop.f32.mrf.mxu0
        %v939 = vadd.f32 0.0, %v938
        %v940 = vpop.f32.mrf.mxu0
        %941 = vmatprep.mubr.f32.mxu0 %v790
        %942 = vmatmul.mubr.f32.gmra.mxu0 %v789
        %v943 = vpop.f32.mrf.mxu0
        %v944 = vadd.f32 0.0, %v943
        %v945 = vpop.f32.mrf.mxu0
        %946 = vmatprep.mubr.f32.mxu0 %v792
        %947 = vmatmul.mubr.f32.gmra.mxu0 %v791
        %v948 = vpop.f32.mrf.mxu0
        %v949 = vadd.f32 0.0, %v948
        %v950 = vpop.f32.mrf.mxu0
        %951 = vmatprep.mubr.f32.mxu0 %v794
        %952 = vmatmul.mubr.f32.gmra.mxu0 %v793
        %v953 = vpop.f32.mrf.mxu0
        %v954 = vadd.f32 0.0, %v953
        %v955 = vpop.f32.mrf.mxu0
        %956 = vmatprep.mubr.f32.mxu0 %v796
        %957 = vmatmul.mubr.f32.gmra.mxu0 %v795
        %v958 = vpop.f32.mrf.mxu0
        %v959 = vadd.f32 0.0, %v958
        %v960 = vpop.f32.mrf.mxu0
        %961 = vmatprep.mubr.f32.mxu0 %v798
        %962 = vmatmul.mubr.f32.gmra.mxu0 %v797
        %v963 = vpop.f32.mrf.mxu0
        %v964 = vadd.f32 0.0, %v963
        %v965 = vpop.f32.mrf.mxu0
        %966 = vmatprep.mubr.f32.mxu0 %v800
        %967 = vmatmul.mubr.f32.gmra.mxu0 %v799
        %v968 = vpop.f32.mrf.mxu0
        %v969 = vadd.f32 0.0, %v968
        %v970 = vpop.f32.mrf.mxu0
        %971 = vmatprep.mubr.f32.mxu0 %v802
        %972 = vmatmul.mubr.f32.gmra.mxu0 %v801
        %v973 = vpop.f32.mrf.mxu0
        %v974 = vadd.f32 0.0, %v973
        %v975 = vpop.f32.mrf.mxu0
        %976 = vmatprep.mubr.f32.mxu0 %v804
        %977 = vmatmul.mubr.f32.gmra.mxu0 %v803
        %v978 = vpop.f32.mrf.mxu0
        %v979 = vadd.f32 0.0, %v978
        %v980 = vpop.f32.mrf.mxu0
        %981 = vmatprep.mubr.f32.mxu0 %v806
        %982 = vmatmul.mubr.f32.gmra.mxu0 %v805
        %v983 = vpop.f32.mrf.mxu0
        %v984 = vadd.f32 0.0, %v983
        %v985 = vpop.f32.mrf.mxu0
        %986 = vmatprep.mubr.f32.mxu0 %v808
        %987 = vmatmul.mubr.f32.gmra.mxu0 %v807
        %v988 = vpop.f32.mrf.mxu0
        %v989 = vadd.f32 0.0, %v988
        %v990 = vpop.f32.mrf.mxu0
        %991 = vmatprep.mubr.f32.mxu0 %v810
        %992 = vmatmul.mubr.f32.gmra.mxu0 %v809
        %v993 = vpop.f32.mrf.mxu0
        %v994 = vadd.f32 0.0, %v993
        %v995 = vpop.f32.mrf.mxu0
        %996 = vmatprep.mubr.f32.mxu0 %v812
        %997 = vmatmul.mubr.f32.gmra.mxu0 %v811
        %v998 = vpop.f32.mrf.mxu0
        %v999 = vadd.f32 0.0, %v998
        %v1000 = vpop.f32.mrf.mxu0
        %1001 = vmatprep.mubr.f32.mxu0 %v814
        %1002 = vmatmul.mubr.f32.gmra.mxu0 %v813
        %v1003 = vpop.f32.mrf.mxu0
        %v1004 = vadd.f32 0.0, %v1003
        %v1005 = vpop.f32.mrf.mxu0
        %1006 = vmatprep.mubr.f32.mxu0 %v816
        %1007 = vmatmul.mubr.f32.gmra.mxu0 %v815
        %v1008 = vpop.f32.mrf.mxu0
        %v1009 = vadd.f32 0.0, %v1008
        %v1010 = vpop.f32.mrf.mxu0
        %1011 = vmatprep.mubr.f32.mxu0 %v818
        %1012 = vmatmul.mubr.f32.gmra.mxu0 %v817
        %v1013 = vpop.f32.mrf.mxu0
        %v1014 = vadd.f32 0.0, %v1013
        %v1015 = vpop.f32.mrf.mxu0
        %1016 = vmatprep.mubr.f32.mxu0 %v820
        %1017 = vmatmul.mubr.f32.gmra.mxu0 %v819
        %v1018 = vpop.f32.mrf.mxu0
        %v1019 = vadd.f32 0.0, %v1018
        %v1020 = vpop.f32.mrf.mxu0
        %1021 = vmatprep.mubr.f32.mxu0 %v822
        %1022 = vmatmul.mubr.f32.gmra.mxu0 %v821
        %v1023 = vpop.f32.mrf.mxu0
        %v1024 = vadd.f32 0.0, %v1023
        %v1025 = vpop.f32.mrf.mxu0
        %1026 = vmatprep.mubr.f32.mxu0 %v824
        %1027 = vmatmul.mubr.f32.gmra.mxu0 %v823
        %v1028 = vpop.f32.mrf.mxu0
        %v1029 = vadd.f32 0.0, %v1028
        %v1030 = vpop.f32.mrf.mxu0
        %1031 = vmatprep.mubr.f32.mxu0 %v826
        %1032 = vmatmul.mubr.f32.gmra.mxu0 %v825
        %v1033 = vpop.f32.mrf.mxu0
        %v1034 = vadd.f32 0.0, %v1033
        %v1035 = vpop.f32.mrf.mxu0
        %1036 = vmatprep.mubr.f32.mxu0 %v828
        %1037 = vmatmul.mubr.f32.gmra.mxu0 %v827
        %v1038 = vpop.f32.mrf.mxu0
        %v1039 = vadd.f32 0.0, %v1038
        %v1040 = vpop.f32.mrf.mxu0
        %1041 = vmatprep.mubr.f32.mxu0 %v830
        %1042 = vmatmul.mubr.f32.gmra.mxu0 %v829
        %v1043 = vpop.f32.mrf.mxu0
        %v1044 = vadd.f32 0.0, %v1043
        %v1045 = vpop.f32.mrf.mxu0
        %1046 = vmatprep.mubr.f32.mxu0 %v832
        %1047 = vmatmul.mubr.f32.gmra.mxu0 %v831
        %v1048 = vpop.f32.mrf.mxu0
        %v1049 = vadd.f32 0.0, %v1048
        %v1050 = vpop.f32.mrf.mxu0
        %1051 = vmatprep.mubr.f32.mxu0 %v834
        %1052 = vmatmul.mubr.f32.gmra.mxu0 %v833
        %v1053 = vpop.f32.mrf.mxu0
        %v1054 = vadd.f32 0.0, %v1053
        %v1055 = vpop.f32.mrf.mxu0
        %1056 = vdwg.mxu0
        %1057 = vst [vmem:[#allocation2] sm:$0xff] %v934
        %1058 = vst [vmem:[#allocation2 + $0x8] sm:$0xff] %v939
        %1059 = vst [vmem:[#allocation2 + $0x10] sm:$0xff] %v944
        %1060 = vst [vmem:[#allocation2 + $0x18] sm:$0xff] %v949
        %1061 = vst [vmem:[#allocation2 + $0x20] sm:$0xff] %v954
        %1062 = vst [vmem:[#allocation2 + $0x28] sm:$0xff] %v959
        %1063 = vst [vmem:[#allocation2 + $0x30] sm:$0xff] %v964
        %1064 = vst [vmem:[#allocation2 + $0x38] sm:$0xff] %v969
        %1065 = vst [vmem:[#allocation2 + $0x40] sm:$0xff] %v974
        %1066 = vst [vmem:[#allocation2 + $0x48] sm:$0xff] %v979
        %1067 = vst [vmem:[#allocation2 + $0x50] sm:$0xff] %v984
        %1068 = vst [vmem:[#allocation2 + $0x58] sm:$0xff] %v989
        %1069 = vst [vmem:[#allocation2 + $0x60] sm:$0xff] %v994
        %1070 = vst [vmem:[#allocation2 + $0x68] sm:$0xff] %v999
        %1071 = vst [vmem:[#allocation2 + $0x70] sm:$0xff] %v1004
        %1072 = vst [vmem:[#allocation2 + $0x78] sm:$0xff] %v1009
        %1073 = vst [vmem:[#allocation2 + $0x80] sm:$0xff] %v1014
        %1074 = vst [vmem:[#allocation2 + $0x88] sm:$0xff] %v1019
        %1075 = vst [vmem:[#allocation2 + $0x90] sm:$0xff] %v1024
        %1076 = vst [vmem:[#allocation2 + $0x98] sm:$0xff] %v1029
        %1077 = vst [vmem:[#allocation2 + $0xa0] sm:$0xff] %v1034
        %1078 = vst [vmem:[#allocation2 + $0xa8] sm:$0xff] %v1039
        %1079 = vst [vmem:[#allocation2 + $0xb0] sm:$0xff] %v1044
        %1080 = vst [vmem:[#allocation2 + $0xb8] sm:$0xff] %v1049
        %1081 = vst [vmem:[#allocation2 + $0xc0] sm:$0xff] %v1054
        %v1082 = vld [vmem:[#allocation6 + $0x10] sm:$0xff]
        %v1083 = vld [vmem:[#allocation6 + $0x18] sm:$0xff]
        %v1084 = vld [vmem:[#allocation6 + $0x30] sm:$0xff]
        %v1085 = vld [vmem:[#allocation6 + $0x38] sm:$0xff]
        %v1086 = vld [vmem:[#allocation6 + $0x50] sm:$0xff]
        %v1087 = vld [vmem:[#allocation6 + $0x58] sm:$0xff]
        %v1088 = vld [vmem:[#allocation6 + $0x70] sm:$0xff]
        %v1089 = vld [vmem:[#allocation6 + $0x78] sm:$0xff]
        %v1090 = vld [vmem:[#allocation6 + $0x90] sm:$0xff]
        %v1091 = vld [vmem:[#allocation6 + $0x98] sm:$0xff]
        %v1092 = vld [vmem:[#allocation6 + $0xb0] sm:$0xff]
        %v1093 = vld [vmem:[#allocation6 + $0xb8] sm:$0xff]
        %v1094 = vld [vmem:[#allocation6 + $0xd0] sm:$0xff]
        %v1095 = vld [vmem:[#allocation6 + $0xd8] sm:$0xff]
        %v1096 = vld [vmem:[#allocation6 + $0xf0] sm:$0xff]
        %v1097 = vld [vmem:[#allocation6 + $0xf8] sm:$0xff]
        %v1098 = vld [vmem:[#allocation6 + $0x110] sm:$0xff]
        %v1099 = vld [vmem:[#allocation6 + $0x118] sm:$0xff]
        %v1100 = vld [vmem:[#allocation6 + $0x130] sm:$0xff]
        %v1101 = vld [vmem:[#allocation6 + $0x138] sm:$0xff]
        %v1102 = vld [vmem:[#allocation6 + $0x150] sm:$0xff]
        %v1103 = vld [vmem:[#allocation6 + $0x158] sm:$0xff]
        %v1104 = vld [vmem:[#allocation6 + $0x170] sm:$0xff]
        %v1105 = vld [vmem:[#allocation6 + $0x178] sm:$0xff]
        %v1106 = vld [vmem:[#allocation6 + $0x190] sm:$0xff]
        %v1107 = vld [vmem:[#allocation6 + $0x198] sm:$0xff]
        %v1108 = vld [vmem:[#allocation6 + $0x1b0] sm:$0xff]
        %v1109 = vld [vmem:[#allocation6 + $0x1b8] sm:$0xff]
        %v1110 = vld [vmem:[#allocation6 + $0x1d0] sm:$0xff]
        %v1111 = vld [vmem:[#allocation6 + $0x1d8] sm:$0xff]
        %v1112 = vld [vmem:[#allocation6 + $0x1f0] sm:$0xff]
        %v1113 = vld [vmem:[#allocation6 + $0x1f8] sm:$0xff]
        %v1114 = vld [vmem:[#allocation8 + $0x2] sm:$0x3]
        %v1116 = vlaneseq
        %v1117 = vshrl.u32 %v1116, 7
        %v1118 = vsub.s32 0, %v1117
        %v1119 = vrot.slane %v1114, %v1118
        %v1120 = vlaneseq
        %v1121 = vshrl.u32 %v1120, 7
        %v1122 = vsub.s32 1, %v1121
        %v1123 = vrot.slane %v1114, %v1122
        %1126 = vmatprep.subr.mxu0 %v1113
        %1127 = vmatpush1.msra.mxu0 %v1112
        %1128 = vmatprep.subr.mxu0 %v1111
        %1129 = vmatpush1.msra.mxu0 %v1110
        %1130 = vmatprep.subr.mxu0 %v1109
        %1131 = vmatpush1.msra.mxu0 %v1108
        %1132 = vmatprep.subr.mxu0 %v1107
        %1133 = vmatpush1.msra.mxu0 %v1106
        %1134 = vmatprep.subr.mxu0 %v1105
        %1135 = vmatpush1.msra.mxu0 %v1104
        %1136 = vmatprep.subr.mxu0 %v1103
        %1137 = vmatpush1.msra.mxu0 %v1102
        %1138 = vmatprep.subr.mxu0 %v1101
        %1139 = vmatpush1.msra.mxu0 %v1100
        %1140 = vmatprep.subr.mxu0 %v1099
        %1141 = vmatpush1.msra.mxu0 %v1098
        %1142 = vmatprep.subr.mxu0 %v1097
        %1143 = vmatpush1.msra.mxu0 %v1096
        %1144 = vmatprep.subr.mxu0 %v1095
        %1145 = vmatpush1.msra.mxu0 %v1094
        %1146 = vmatprep.subr.mxu0 %v1093
        %1147 = vmatpush1.msra.mxu0 %v1092
        %1148 = vmatprep.subr.mxu0 %v1091
        %1149 = vmatpush1.msra.mxu0 %v1090
        %1150 = vmatprep.subr.mxu0 %v1089
        %1151 = vmatpush1.msra.mxu0 %v1088
        %1152 = vmatprep.subr.mxu0 %v1087
        %1153 = vmatpush1.msra.mxu0 %v1086
        %1154 = vmatprep.subr.mxu0 %v1085
        %1155 = vmatpush1.msra.mxu0 %v1084
        %1156 = vmatprep.subr.mxu0 %v1083
        %1157 = vmatpush1.msra.mxu0 %v1082
        %1158 = vmatprep.subr.mxu0 0.0
        %1159 = vmatpush2.msra.mxu0 0.0
        %1160 = vmatprep.subr.mxu0 0.0
        %1161 = vmatpush2.msra.mxu0 0.0
        %1162 = vmatprep.subr.mxu0 0.0
        %1163 = vmatpush2.msra.mxu0 0.0
        %1164 = vmatprep.subr.mxu0 0.0
        %1165 = vmatpush2.msra.mxu0 0.0
        %1166 = vmatprep.subr.mxu0 0.0
        %1167 = vmatpush2.msra.mxu0 0.0
        %1168 = vmatprep.subr.mxu0 0.0
        %1169 = vmatpush2.msra.mxu0 0.0
        %1170 = vmatprep.subr.mxu0 0.0
        %1171 = vmatpush2.msra.mxu0 0.0
        %1172 = vmatprep.subr.mxu0 0.0
        %1173 = vmatpush2.msra.mxu0 0.0
        %1174 = vmatprep.subr.mxu0 0.0
        %1175 = vmatpush2.msra.mxu0 0.0
        %1176 = vmatprep.subr.mxu0 0.0
        %1177 = vmatpush2.msra.mxu0 0.0
        %1178 = vmatprep.subr.mxu0 0.0
        %1179 = vmatpush2.msra.mxu0 0.0
        %1180 = vmatprep.subr.mxu0 0.0
        %1181 = vmatpush2.msra.mxu0 0.0
        %1182 = vmatprep.subr.mxu0 0.0
        %1183 = vmatpush2.msra.mxu0 0.0
        %1184 = vmatprep.subr.mxu0 0.0
        %1185 = vmatpush2.msra.mxu0 0.0
        %1186 = vmatprep.subr.mxu0 0.0
        %1187 = vmatpush2.msra.mxu0 0.0
        %1188 = vmatprep.subr.mxu0 0.0
        %1189 = vmatpush2.msra.mxu0 0.0
        %1190 = vmatprep.mubr.f32.mxu0 0.0
        %1191 = vmatmul.mubr.f32.gmra.mxu0 %v301
        %v1192 = vpop.f32.mrf.mxu0
        %v1193 = vadd.f32 %v1119, %v1192
        %v1194 = vpop.f32.mrf.mxu0
        %v1195 = vadd.f32 %v1123, %v1194
        %1196 = vmatprep.mubr.f32.mxu0 0.0
        %1197 = vmatmul.mubr.f32.gmra.mxu0 %v302
        %v1198 = vpop.f32.mrf.mxu0
        %v1199 = vadd.f32 %v1119, %v1198
        %v1200 = vpop.f32.mrf.mxu0
        %v1201 = vadd.f32 %v1123, %v1200
        %1202 = vmatprep.mubr.f32.mxu0 0.0
        %1203 = vmatmul.mubr.f32.gmra.mxu0 %v303
        %v1204 = vpop.f32.mrf.mxu0
        %v1205 = vadd.f32 %v1119, %v1204
        %v1206 = vpop.f32.mrf.mxu0
        %v1207 = vadd.f32 %v1123, %v1206
        %1208 = vmatprep.mubr.f32.mxu0 0.0
        %1209 = vmatmul.mubr.f32.gmra.mxu0 %v304
        %v1210 = vpop.f32.mrf.mxu0
        %v1211 = vadd.f32 %v1119, %v1210
        %v1212 = vpop.f32.mrf.mxu0
        %v1213 = vadd.f32 %v1123, %v1212
        %1214 = vmatprep.mubr.f32.mxu0 0.0
        %1215 = vmatmul.mubr.f32.gmra.mxu0 %v305
        %v1216 = vpop.f32.mrf.mxu0
        %v1217 = vadd.f32 %v1119, %v1216
        %v1218 = vpop.f32.mrf.mxu0
        %v1219 = vadd.f32 %v1123, %v1218
        %1220 = vmatprep.mubr.f32.mxu0 0.0
        %1221 = vmatmul.mubr.f32.gmra.mxu0 %v306
        %v1222 = vpop.f32.mrf.mxu0
        %v1223 = vadd.f32 %v1119, %v1222
        %v1224 = vpop.f32.mrf.mxu0
        %v1225 = vadd.f32 %v1123, %v1224
        %1226 = vmatprep.mubr.f32.mxu0 0.0
        %1227 = vmatmul.mubr.f32.gmra.mxu0 %v307
        %v1228 = vpop.f32.mrf.mxu0
        %v1229 = vadd.f32 %v1119, %v1228
        %v1230 = vpop.f32.mrf.mxu0
        %v1231 = vadd.f32 %v1123, %v1230
        %1232 = vmatprep.mubr.f32.mxu0 0.0
        %1233 = vmatmul.mubr.f32.gmra.mxu0 %v308
        %v1234 = vpop.f32.mrf.mxu0
        %v1235 = vadd.f32 %v1119, %v1234
        %v1236 = vpop.f32.mrf.mxu0
        %v1237 = vadd.f32 %v1123, %v1236
        %1238 = vmatprep.mubr.f32.mxu0 0.0
        %1239 = vmatmul.mubr.f32.gmra.mxu0 %v309
        %v1240 = vpop.f32.mrf.mxu0
        %v1241 = vadd.f32 %v1119, %v1240
        %v1242 = vpop.f32.mrf.mxu0
        %v1243 = vadd.f32 %v1123, %v1242
        %1244 = vmatprep.mubr.f32.mxu0 0.0
        %1245 = vmatmul.mubr.f32.gmra.mxu0 %v310
        %v1246 = vpop.f32.mrf.mxu0
        %v1247 = vadd.f32 %v1119, %v1246
        %v1248 = vpop.f32.mrf.mxu0
        %v1249 = vadd.f32 %v1123, %v1248
        %1250 = vmatprep.mubr.f32.mxu0 0.0
        %1251 = vmatmul.mubr.f32.gmra.mxu0 %v311
        %v1252 = vpop.f32.mrf.mxu0
        %v1253 = vadd.f32 %v1119, %v1252
        %v1254 = vpop.f32.mrf.mxu0
        %v1255 = vadd.f32 %v1123, %v1254
        %1256 = vmatprep.mubr.f32.mxu0 0.0
        %1257 = vmatmul.mubr.f32.gmra.mxu0 %v312
        %v1258 = vpop.f32.mrf.mxu0
        %v1259 = vadd.f32 %v1119, %v1258
        %v1260 = vpop.f32.mrf.mxu0
        %v1261 = vadd.f32 %v1123, %v1260
        %1262 = vmatprep.mubr.f32.mxu0 0.0
        %1263 = vmatmul.mubr.f32.gmra.mxu0 %v313
        %v1264 = vpop.f32.mrf.mxu0
        %v1265 = vadd.f32 %v1119, %v1264
        %v1266 = vpop.f32.mrf.mxu0
        %v1267 = vadd.f32 %v1123, %v1266
        %1268 = vmatprep.mubr.f32.mxu0 0.0
        %1269 = vmatmul.mubr.f32.gmra.mxu0 %v314
        %v1270 = vpop.f32.mrf.mxu0
        %v1271 = vadd.f32 %v1119, %v1270
        %v1272 = vpop.f32.mrf.mxu0
        %v1273 = vadd.f32 %v1123, %v1272
        %1274 = vmatprep.mubr.f32.mxu0 0.0
        %1275 = vmatmul.mubr.f32.gmra.mxu0 %v315
        %v1276 = vpop.f32.mrf.mxu0
        %v1277 = vadd.f32 %v1119, %v1276
        %v1278 = vpop.f32.mrf.mxu0
        %v1279 = vadd.f32 %v1123, %v1278
        %1280 = vmatprep.mubr.f32.mxu0 0.0
        %1281 = vmatmul.mubr.f32.gmra.mxu0 %v316
        %v1282 = vpop.f32.mrf.mxu0
        %v1283 = vadd.f32 %v1119, %v1282
        %v1284 = vpop.f32.mrf.mxu0
        %v1285 = vadd.f32 %v1123, %v1284
        %1286 = vmatprep.mubr.f32.mxu0 0.0
        %1287 = vmatmul.mubr.f32.gmra.mxu0 %v317
        %v1288 = vpop.f32.mrf.mxu0
        %v1289 = vadd.f32 %v1119, %v1288
        %v1290 = vpop.f32.mrf.mxu0
        %v1291 = vadd.f32 %v1123, %v1290
        %1292 = vmatprep.mubr.f32.mxu0 0.0
        %1293 = vmatmul.mubr.f32.gmra.mxu0 %v318
        %v1294 = vpop.f32.mrf.mxu0
        %v1295 = vadd.f32 %v1119, %v1294
        %v1296 = vpop.f32.mrf.mxu0
        %v1297 = vadd.f32 %v1123, %v1296
        %1298 = vmatprep.mubr.f32.mxu0 0.0
        %1299 = vmatmul.mubr.f32.gmra.mxu0 %v319
        %v1300 = vpop.f32.mrf.mxu0
        %v1301 = vadd.f32 %v1119, %v1300
        %v1302 = vpop.f32.mrf.mxu0
        %v1303 = vadd.f32 %v1123, %v1302
        %1304 = vmatprep.mubr.f32.mxu0 0.0
        %1305 = vmatmul.mubr.f32.gmra.mxu0 %v320
        %v1306 = vpop.f32.mrf.mxu0
        %v1307 = vadd.f32 %v1119, %v1306
        %v1308 = vpop.f32.mrf.mxu0
        %v1309 = vadd.f32 %v1123, %v1308
        %1310 = vmatprep.mubr.f32.mxu0 0.0
        %1311 = vmatmul.mubr.f32.gmra.mxu0 %v321
        %v1312 = vpop.f32.mrf.mxu0
        %v1313 = vadd.f32 %v1119, %v1312
        %v1314 = vpop.f32.mrf.mxu0
        %v1315 = vadd.f32 %v1123, %v1314
        %1316 = vmatprep.mubr.f32.mxu0 0.0
        %1317 = vmatmul.mubr.f32.gmra.mxu0 %v322
        %v1318 = vpop.f32.mrf.mxu0
        %v1319 = vadd.f32 %v1119, %v1318
        %v1320 = vpop.f32.mrf.mxu0
        %v1321 = vadd.f32 %v1123, %v1320
        %1322 = vmatprep.mubr.f32.mxu0 0.0
        %1323 = vmatmul.mubr.f32.gmra.mxu0 %v323
        %v1324 = vpop.f32.mrf.mxu0
        %v1325 = vadd.f32 %v1119, %v1324
        %v1326 = vpop.f32.mrf.mxu0
        %v1327 = vadd.f32 %v1123, %v1326
        %1328 = vmatprep.mubr.f32.mxu0 0.0
        %1329 = vmatmul.mubr.f32.gmra.mxu0 %v324
        %v1330 = vpop.f32.mrf.mxu0
        %v1331 = vadd.f32 %v1119, %v1330
        %v1332 = vpop.f32.mrf.mxu0
        %v1333 = vadd.f32 %v1123, %v1332
        %1334 = vmatprep.mubr.f32.mxu0 0.0
        %1335 = vmatmul.mubr.f32.gmra.mxu0 %v325
        %v1336 = vpop.f32.mrf.mxu0
        %v1337 = vadd.f32 %v1119, %v1336
        %v1338 = vpop.f32.mrf.mxu0
        %v1339 = vadd.f32 %v1123, %v1338
        %1340 = vdwg.mxu0
        %v1341 = vmul.f32 %v1193, 0.5
        %v1342 = vmul.f32 %v1195, 0.5
        %v1343 = vmul.f32 %v1199, 0.5
        %v1344 = vmul.f32 %v1201, 0.5
        %v1345 = vmul.f32 %v1205, 0.5
        %v1346 = vmul.f32 %v1207, 0.5
        %v1347 = vmul.f32 %v1211, 0.5
        %v1348 = vmul.f32 %v1213, 0.5
        %v1349 = vmul.f32 %v1217, 0.5
        %v1350 = vmul.f32 %v1219, 0.5
        %v1351 = vmul.f32 %v1223, 0.5
        %v1352 = vmul.f32 %v1225, 0.5
        %v1353 = vmul.f32 %v1229, 0.5
        %v1354 = vmul.f32 %v1231, 0.5
        %v1355 = vmul.f32 %v1235, 0.5
        %v1356 = vmul.f32 %v1237, 0.5
        %v1357 = vmul.f32 %v1241, 0.5
        %v1358 = vmul.f32 %v1243, 0.5
        %v1359 = vmul.f32 %v1247, 0.5
        %v1360 = vmul.f32 %v1249, 0.5
        %v1361 = vmul.f32 %v1253, 0.5
        %v1362 = vmul.f32 %v1255, 0.5
        %v1363 = vmul.f32 %v1259, 0.5
        %v1364 = vmul.f32 %v1261, 0.5
        %v1365 = vmul.f32 %v1265, 0.5
        %v1366 = vmul.f32 %v1267, 0.5
        %v1367 = vmul.f32 %v1271, 0.5
        %v1368 = vmul.f32 %v1273, 0.5
        %v1369 = vmul.f32 %v1277, 0.5
        %v1370 = vmul.f32 %v1279, 0.5
        %v1371 = vmul.f32 %v1283, 0.5
        %v1372 = vmul.f32 %v1285, 0.5
        %v1373 = vmul.f32 %v1289, 0.5
        %v1374 = vmul.f32 %v1291, 0.5
        %v1375 = vmul.f32 %v1295, 0.5
        %v1376 = vmul.f32 %v1297, 0.5
        %v1377 = vmul.f32 %v1301, 0.5
        %v1378 = vmul.f32 %v1303, 0.5
        %v1379 = vmul.f32 %v1307, 0.5
        %v1380 = vmul.f32 %v1309, 0.5
        %v1381 = vmul.f32 %v1313, 0.5
        %v1382 = vmul.f32 %v1315, 0.5
        %v1383 = vmul.f32 %v1319, 0.5
        %v1384 = vmul.f32 %v1321, 0.5
        %v1385 = vmul.f32 %v1325, 0.5
        %v1386 = vmul.f32 %v1327, 0.5
        %v1387 = vmul.f32 %v1331, 0.5
        %v1388 = vmul.f32 %v1333, 0.5
        %v1389 = vmul.f32 %v1337, 0.5
        %v1390 = vmul.f32 %v1339, 0.5
        %v1391 = vmul.f32 %v1193, 0.70710677
        %v1392 = vmul.f32 %v1195, 0.70710677
        %v1393 = vmul.f32 %v1199, 0.70710677
        %v1394 = vmul.f32 %v1201, 0.70710677
        %v1395 = vmul.f32 %v1205, 0.70710677
        %v1396 = vmul.f32 %v1207, 0.70710677
        %v1397 = vmul.f32 %v1211, 0.70710677
        %v1398 = vmul.f32 %v1213, 0.70710677
        %v1399 = vmul.f32 %v1217, 0.70710677
        %v1400 = vmul.f32 %v1219, 0.70710677
        %v1401 = vmul.f32 %v1223, 0.70710677
        %v1402 = vmul.f32 %v1225, 0.70710677
        %v1403 = vmul.f32 %v1229, 0.70710677
        %v1404 = vmul.f32 %v1231, 0.70710677
        %v1405 = vmul.f32 %v1235, 0.70710677
        %v1406 = vmul.f32 %v1237, 0.70710677
        %v1407 = vmul.f32 %v1241, 0.70710677
        %v1408 = vmul.f32 %v1243, 0.70710677
        %v1409 = vmul.f32 %v1247, 0.70710677
        %v1410 = vmul.f32 %v1249, 0.70710677
        %v1411 = vmul.f32 %v1253, 0.70710677
        %v1412 = vmul.f32 %v1255, 0.70710677
        %v1413 = vmul.f32 %v1259, 0.70710677
        %v1414 = vmul.f32 %v1261, 0.70710677
        %v1415 = vmul.f32 %v1265, 0.70710677
        %v1416 = vmul.f32 %v1267, 0.70710677
        %v1417 = vmul.f32 %v1271, 0.70710677
        %v1418 = vmul.f32 %v1273, 0.70710677
        %v1419 = vmul.f32 %v1277, 0.70710677
        %v1420 = vmul.f32 %v1279, 0.70710677
        %v1421 = vmul.f32 %v1283, 0.70710677
        %v1422 = vmul.f32 %v1285, 0.70710677
        %v1423 = vmul.f32 %v1289, 0.70710677
        %v1424 = vmul.f32 %v1291, 0.70710677
        %v1425 = vmul.f32 %v1295, 0.70710677
        %v1426 = vmul.f32 %v1297, 0.70710677
        %v1427 = vmul.f32 %v1301, 0.70710677
        %v1428 = vmul.f32 %v1303, 0.70710677
        %v1429 = vmul.f32 %v1307, 0.70710677
        %v1430 = vmul.f32 %v1309, 0.70710677
        %v1431 = vmul.f32 %v1313, 0.70710677
        %v1432 = vmul.f32 %v1315, 0.70710677
        %v1433 = vmul.f32 %v1319, 0.70710677
        %v1434 = vmul.f32 %v1321, 0.70710677
        %v1435 = vmul.f32 %v1325, 0.70710677
        %v1436 = vmul.f32 %v1327, 0.70710677
        %v1437 = vmul.f32 %v1331, 0.70710677
        %v1438 = vmul.f32 %v1333, 0.70710677
        %v1439 = vmul.f32 %v1337, 0.70710677
        %v1440 = vmul.f32 %v1339, 0.70710677
        %v1441 = verf.f32.pop %v1391
        %v1442 = verf.f32.pop %v1392
        %v1443 = verf.f32.pop %v1393
        %v1444 = verf.f32.pop %v1394
        %v1445 = verf.f32.pop %v1395
        %v1446 = verf.f32.pop %v1396
        %v1447 = verf.f32.pop %v1397
        %v1448 = verf.f32.pop %v1398
        %v1449 = verf.f32.pop %v1399
        %v1450 = verf.f32.pop %v1400
        %v1451 = verf.f32.pop %v1401
        %v1452 = verf.f32.pop %v1402
        %v1453 = verf.f32.pop %v1403
        %v1454 = verf.f32.pop %v1404
        %v1455 = verf.f32.pop %v1405
        %v1456 = verf.f32.pop %v1406
        %v1457 = verf.f32.pop %v1407
        %v1458 = verf.f32.pop %v1408
        %v1459 = verf.f32.pop %v1409
        %v1460 = verf.f32.pop %v1410
        %v1461 = verf.f32.pop %v1411
        %v1462 = verf.f32.pop %v1412
        %v1463 = verf.f32.pop %v1413
        %v1464 = verf.f32.pop %v1414
        %v1465 = verf.f32.pop %v1415
        %v1466 = verf.f32.pop %v1416
        %v1467 = verf.f32.pop %v1417
        %v1468 = verf.f32.pop %v1418
        %v1469 = verf.f32.pop %v1419
        %v1470 = verf.f32.pop %v1420
        %v1471 = verf.f32.pop %v1421
        %v1472 = verf.f32.pop %v1422
        %v1473 = verf.f32.pop %v1423
        %v1474 = verf.f32.pop %v1424
        %v1475 = verf.f32.pop %v1425
        %v1476 = verf.f32.pop %v1426
        %v1477 = verf.f32.pop %v1427
        %v1478 = verf.f32.pop %v1428
        %v1479 = verf.f32.pop %v1429
        %v1480 = verf.f32.pop %v1430
        %v1481 = verf.f32.pop %v1431
        %v1482 = verf.f32.pop %v1432
        %v1483 = verf.f32.pop %v1433
        %v1484 = verf.f32.pop %v1434
        %v1485 = verf.f32.pop %v1435
        %v1486 = verf.f32.pop %v1436
        %v1487 = verf.f32.pop %v1437
        %v1488 = verf.f32.pop %v1438
        %v1489 = verf.f32.pop %v1439
        %v1490 = verf.f32.pop %v1440
        %v1491 = vadd.f32 %v1441, 1.0
        %v1492 = vadd.f32 %v1442, 1.0
        %v1493 = vadd.f32 %v1443, 1.0
        %v1494 = vadd.f32 %v1444, 1.0
        %v1495 = vadd.f32 %v1445, 1.0
        %v1496 = vadd.f32 %v1446, 1.0
        %v1497 = vadd.f32 %v1447, 1.0
        %v1498 = vadd.f32 %v1448, 1.0
        %v1499 = vadd.f32 %v1449, 1.0
        %v1500 = vadd.f32 %v1450, 1.0
        %v1501 = vadd.f32 %v1451, 1.0
        %v1502 = vadd.f32 %v1452, 1.0
        %v1503 = vadd.f32 %v1453, 1.0
        %v1504 = vadd.f32 %v1454, 1.0
        %v1505 = vadd.f32 %v1455, 1.0
        %v1506 = vadd.f32 %v1456, 1.0
        %v1507 = vadd.f32 %v1457, 1.0
        %v1508 = vadd.f32 %v1458, 1.0
        %v1509 = vadd.f32 %v1459, 1.0
        %v1510 = vadd.f32 %v1460, 1.0
        %v1511 = vadd.f32 %v1461, 1.0
        %v1512 = vadd.f32 %v1462, 1.0
        %v1513 = vadd.f32 %v1463, 1.0
        %v1514 = vadd.f32 %v1464, 1.0
        %v1515 = vadd.f32 %v1465, 1.0
        %v1516 = vadd.f32 %v1466, 1.0
        %v1517 = vadd.f32 %v1467, 1.0
        %v1518 = vadd.f32 %v1468, 1.0
        %v1519 = vadd.f32 %v1469, 1.0
        %v1520 = vadd.f32 %v1470, 1.0
        %v1521 = vadd.f32 %v1471, 1.0
        %v1522 = vadd.f32 %v1472, 1.0
        %v1523 = vadd.f32 %v1473, 1.0
        %v1524 = vadd.f32 %v1474, 1.0
        %v1525 = vadd.f32 %v1475, 1.0
        %v1526 = vadd.f32 %v1476, 1.0
        %v1527 = vadd.f32 %v1477, 1.0
        %v1528 = vadd.f32 %v1478, 1.0
        %v1529 = vadd.f32 %v1479, 1.0
        %v1530 = vadd.f32 %v1480, 1.0
        %v1531 = vadd.f32 %v1481, 1.0
        %v1532 = vadd.f32 %v1482, 1.0
        %v1533 = vadd.f32 %v1483, 1.0
        %v1534 = vadd.f32 %v1484, 1.0
        %v1535 = vadd.f32 %v1485, 1.0
        %v1536 = vadd.f32 %v1486, 1.0
        %v1537 = vadd.f32 %v1487, 1.0
        %v1538 = vadd.f32 %v1488, 1.0
        %v1539 = vadd.f32 %v1489, 1.0
        %v1540 = vadd.f32 %v1490, 1.0
        %v1541 = vmul.f32 %v1341, %v1491
        %v1542 = vmul.f32 %v1342, %v1492
        %v1543 = vmul.f32 %v1343, %v1493
        %v1544 = vmul.f32 %v1344, %v1494
        %v1545 = vmul.f32 %v1345, %v1495
        %v1546 = vmul.f32 %v1346, %v1496
        %v1547 = vmul.f32 %v1347, %v1497
        %v1548 = vmul.f32 %v1348, %v1498
        %v1549 = vmul.f32 %v1349, %v1499
        %v1550 = vmul.f32 %v1350, %v1500
        %v1551 = vmul.f32 %v1351, %v1501
        %v1552 = vmul.f32 %v1352, %v1502
        %v1553 = vmul.f32 %v1353, %v1503
        %v1554 = vmul.f32 %v1354, %v1504
        %v1555 = vmul.f32 %v1355, %v1505
        %v1556 = vmul.f32 %v1356, %v1506
        %v1557 = vmul.f32 %v1357, %v1507
        %v1558 = vmul.f32 %v1358, %v1508
        %v1559 = vmul.f32 %v1359, %v1509
        %v1560 = vmul.f32 %v1360, %v1510
        %v1561 = vmul.f32 %v1361, %v1511
        %v1562 = vmul.f32 %v1362, %v1512
        %v1563 = vmul.f32 %v1363, %v1513
        %v1564 = vmul.f32 %v1364, %v1514
        %v1565 = vmul.f32 %v1365, %v1515
        %v1566 = vmul.f32 %v1366, %v1516
        %v1567 = vmul.f32 %v1367, %v1517
        %v1568 = vmul.f32 %v1368, %v1518
        %v1569 = vmul.f32 %v1369, %v1519
        %v1570 = vmul.f32 %v1370, %v1520
        %v1571 = vmul.f32 %v1371, %v1521
        %v1572 = vmul.f32 %v1372, %v1522
        %v1573 = vmul.f32 %v1373, %v1523
        %v1574 = vmul.f32 %v1374, %v1524
        %v1575 = vmul.f32 %v1375, %v1525
        %v1576 = vmul.f32 %v1376, %v1526
        %v1577 = vmul.f32 %v1377, %v1527
        %v1578 = vmul.f32 %v1378, %v1528
        %v1579 = vmul.f32 %v1379, %v1529
        %v1580 = vmul.f32 %v1380, %v1530
        %v1581 = vmul.f32 %v1381, %v1531
        %v1582 = vmul.f32 %v1382, %v1532
        %v1583 = vmul.f32 %v1383, %v1533
        %v1584 = vmul.f32 %v1384, %v1534
        %v1585 = vmul.f32 %v1385, %v1535
        %v1586 = vmul.f32 %v1386, %v1536
        %v1587 = vmul.f32 %v1387, %v1537
        %v1588 = vmul.f32 %v1388, %v1538
        %v1589 = vmul.f32 %v1389, %v1539
        %v1590 = vmul.f32 %v1390, %v1540
        %v1591 = vld [vmem:[#allocation9 + $0x100] sm:$0xff]
        %v1592 = vld [vmem:[#allocation9 + $0x108] sm:$0xff]
        %v1593 = vld [vmem:[#allocation9 + $0x110] sm:$0xff]
        %v1594 = vld [vmem:[#allocation9 + $0x118] sm:$0xff]
        %v1595 = vld [vmem:[#allocation9 + $0x120] sm:$0xff]
        %v1596 = vld [vmem:[#allocation9 + $0x128] sm:$0xff]
        %v1597 = vld [vmem:[#allocation9 + $0x130] sm:$0xff]
        %v1598 = vld [vmem:[#allocation9 + $0x138] sm:$0xff]
        %v1599 = vld [vmem:[#allocation9 + $0x140] sm:$0xff]
        %v1600 = vld [vmem:[#allocation9 + $0x148] sm:$0xff]
        %v1601 = vld [vmem:[#allocation9 + $0x150] sm:$0xff]
        %v1602 = vld [vmem:[#allocation9 + $0x158] sm:$0xff]
        %v1603 = vld [vmem:[#allocation9 + $0x160] sm:$0xff]
        %v1604 = vld [vmem:[#allocation9 + $0x168] sm:$0xff]
        %v1605 = vld [vmem:[#allocation9 + $0x170] sm:$0xff]
        %v1606 = vld [vmem:[#allocation9 + $0x178] sm:$0xff]
        %v1607 = vld [vmem:[#allocation9 + $0x180] sm:$0xff]
        %v1608 = vld [vmem:[#allocation9 + $0x188] sm:$0xff]
        %v1609 = vld [vmem:[#allocation9 + $0x190] sm:$0xff]
        %v1610 = vld [vmem:[#allocation9 + $0x198] sm:$0xff]
        %v1611 = vld [vmem:[#allocation9 + $0x1a0] sm:$0xff]
        %v1612 = vld [vmem:[#allocation9 + $0x1a8] sm:$0xff]
        %v1613 = vld [vmem:[#allocation9 + $0x1b0] sm:$0xff]
        %v1614 = vld [vmem:[#allocation9 + $0x1b8] sm:$0xff]
        %v1615 = vld [vmem:[#allocation9 + $0x1c0] sm:$0xff]
        %v1616 = vld [vmem:[#allocation9 + $0x1c8] sm:$0xff]
        %v1617 = vld [vmem:[#allocation9 + $0x1d0] sm:$0xff]
        %v1618 = vld [vmem:[#allocation9 + $0x1d8] sm:$0xff]
        %v1619 = vld [vmem:[#allocation9 + $0x1e0] sm:$0xff]
        %v1620 = vld [vmem:[#allocation9 + $0x1e8] sm:$0xff]
        %v1621 = vld [vmem:[#allocation9 + $0x1f0] sm:$0xff]
        %v1622 = vld [vmem:[#allocation9 + $0x1f8] sm:$0xff]
        %1623 = vmatprep.subr.mxu0 0.0
        %1624 = vmatpush1.msra.mxu0 %v1606
        %1625 = vmatprep.subr.mxu0 0.0
        %1626 = vmatpush1.msra.mxu0 %v1605
        %1627 = vmatprep.subr.mxu0 0.0
        %1628 = vmatpush1.msra.mxu0 %v1604
        %1629 = vmatprep.subr.mxu0 0.0
        %1630 = vmatpush1.msra.mxu0 %v1603
        %1631 = vmatprep.subr.mxu0 0.0
        %1632 = vmatpush1.msra.mxu0 %v1602
        %1633 = vmatprep.subr.mxu0 0.0
        %1634 = vmatpush1.msra.mxu0 %v1601
        %1635 = vmatprep.subr.mxu0 0.0
        %1636 = vmatpush1.msra.mxu0 %v1600
        %1637 = vmatprep.subr.mxu0 0.0
        %1638 = vmatpush1.msra.mxu0 %v1599
        %1639 = vmatprep.subr.mxu0 0.0
        %1640 = vmatpush1.msra.mxu0 %v1598
        %1641 = vmatprep.subr.mxu0 0.0
        %1642 = vmatpush1.msra.mxu0 %v1597
        %1643 = vmatprep.subr.mxu0 0.0
        %1644 = vmatpush1.msra.mxu0 %v1596
        %1645 = vmatprep.subr.mxu0 0.0
        %1646 = vmatpush1.msra.mxu0 %v1595
        %1647 = vmatprep.subr.mxu0 0.0
        %1648 = vmatpush1.msra.mxu0 %v1594
        %1649 = vmatprep.subr.mxu0 0.0
        %1650 = vmatpush1.msra.mxu0 %v1593
        %1651 = vmatprep.subr.mxu0 0.0
        %1652 = vmatpush1.msra.mxu0 %v1592
        %1653 = vmatprep.subr.mxu0 0.0
        %1654 = vmatpush1.msra.mxu0 %v1591
        %1655 = vmatprep.subr.mxu0 0.0
        %1656 = vmatpush2.msra.mxu0 %v1622
        %1657 = vmatprep.subr.mxu0 0.0
        %1658 = vmatpush2.msra.mxu0 %v1621
        %1659 = vmatprep.subr.mxu0 0.0
        %1660 = vmatpush2.msra.mxu0 %v1620
        %1661 = vmatprep.subr.mxu0 0.0
        %1662 = vmatpush2.msra.mxu0 %v1619
        %1663 = vmatprep.subr.mxu0 0.0
        %1664 = vmatpush2.msra.mxu0 %v1618
        %1665 = vmatprep.subr.mxu0 0.0
        %1666 = vmatpush2.msra.mxu0 %v1617
        %1667 = vmatprep.subr.mxu0 0.0
        %1668 = vmatpush2.msra.mxu0 %v1616
        %1669 = vmatprep.subr.mxu0 0.0
        %1670 = vmatpush2.msra.mxu0 %v1615
        %1671 = vmatprep.subr.mxu0 0.0
        %1672 = vmatpush2.msra.mxu0 %v1614
        %1673 = vmatprep.subr.mxu0 0.0
        %1674 = vmatpush2.msra.mxu0 %v1613
        %1675 = vmatprep.subr.mxu0 0.0
        %1676 = vmatpush2.msra.mxu0 %v1612
        %1677 = vmatprep.subr.mxu0 0.0
        %1678 = vmatpush2.msra.mxu0 %v1611
        %1679 = vmatprep.subr.mxu0 0.0
        %1680 = vmatpush2.msra.mxu0 %v1610
        %1681 = vmatprep.subr.mxu0 0.0
        %1682 = vmatpush2.msra.mxu0 %v1609
        %1683 = vmatprep.subr.mxu0 0.0
        %1684 = vmatpush2.msra.mxu0 %v1608
        %1685 = vmatprep.subr.mxu0 0.0
        %1686 = vmatpush2.msra.mxu0 %v1607
        %1687 = vmatprep.mubr.f32.mxu0 %v1542
        %1688 = vmatmul.mubr.f32.gmra.mxu0 %v1541
        %v1689 = vpop.f32.mrf.mxu0
        %v1690 = vadd.f32 0.0, %v1689
        %v1691 = vpop.f32.mrf.mxu0
        %1692 = vmatprep.mubr.f32.mxu0 %v1544
        %1693 = vmatmul.mubr.f32.gmra.mxu0 %v1543
        %v1694 = vpop.f32.mrf.mxu0
        %v1695 = vadd.f32 0.0, %v1694
        %v1696 = vpop.f32.mrf.mxu0
        %1697 = vmatprep.mubr.f32.mxu0 %v1546
        %1698 = vmatmul.mubr.f32.gmra.mxu0 %v1545
        %v1699 = vpop.f32.mrf.mxu0
        %v1700 = vadd.f32 0.0, %v1699
        %v1701 = vpop.f32.mrf.mxu0
        %1702 = vmatprep.mubr.f32.mxu0 %v1548
        %1703 = vmatmul.mubr.f32.gmra.mxu0 %v1547
        %v1704 = vpop.f32.mrf.mxu0
        %v1705 = vadd.f32 0.0, %v1704
        %v1706 = vpop.f32.mrf.mxu0
        %1707 = vmatprep.mubr.f32.mxu0 %v1550
        %1708 = vmatmul.mubr.f32.gmra.mxu0 %v1549
        %v1709 = vpop.f32.mrf.mxu0
        %v1710 = vadd.f32 0.0, %v1709
        %v1711 = vpop.f32.mrf.mxu0
        %1712 = vmatprep.mubr.f32.mxu0 %v1552
        %1713 = vmatmul.mubr.f32.gmra.mxu0 %v1551
        %v1714 = vpop.f32.mrf.mxu0
        %v1715 = vadd.f32 0.0, %v1714
        %v1716 = vpop.f32.mrf.mxu0
        %1717 = vmatprep.mubr.f32.mxu0 %v1554
        %1718 = vmatmul.mubr.f32.gmra.mxu0 %v1553
        %v1719 = vpop.f32.mrf.mxu0
        %v1720 = vadd.f32 0.0, %v1719
        %v1721 = vpop.f32.mrf.mxu0
        %1722 = vmatprep.mubr.f32.mxu0 %v1556
        %1723 = vmatmul.mubr.f32.gmra.mxu0 %v1555
        %v1724 = vpop.f32.mrf.mxu0
        %v1725 = vadd.f32 0.0, %v1724
        %v1726 = vpop.f32.mrf.mxu0
        %1727 = vmatprep.mubr.f32.mxu0 %v1558
        %1728 = vmatmul.mubr.f32.gmra.mxu0 %v1557
        %v1729 = vpop.f32.mrf.mxu0
        %v1730 = vadd.f32 0.0, %v1729
        %v1731 = vpop.f32.mrf.mxu0
        %1732 = vmatprep.mubr.f32.mxu0 %v1560
        %1733 = vmatmul.mubr.f32.gmra.mxu0 %v1559
        %v1734 = vpop.f32.mrf.mxu0
        %v1735 = vadd.f32 0.0, %v1734
        %v1736 = vpop.f32.mrf.mxu0
        %1737 = vmatprep.mubr.f32.mxu0 %v1562
        %1738 = vmatmul.mubr.f32.gmra.mxu0 %v1561
        %v1739 = vpop.f32.mrf.mxu0
        %v1740 = vadd.f32 0.0, %v1739
        %v1741 = vpop.f32.mrf.mxu0
        %1742 = vmatprep.mubr.f32.mxu0 %v1564
        %1743 = vmatmul.mubr.f32.gmra.mxu0 %v1563
        %v1744 = vpop.f32.mrf.mxu0
        %v1745 = vadd.f32 0.0, %v1744
        %v1746 = vpop.f32.mrf.mxu0
        %1747 = vmatprep.mubr.f32.mxu0 %v1566
        %1748 = vmatmul.mubr.f32.gmra.mxu0 %v1565
        %v1749 = vpop.f32.mrf.mxu0
        %v1750 = vadd.f32 0.0, %v1749
        %v1751 = vpop.f32.mrf.mxu0
        %1752 = vmatprep.mubr.f32.mxu0 %v1568
        %1753 = vmatmul.mubr.f32.gmra.mxu0 %v1567
        %v1754 = vpop.f32.mrf.mxu0
        %v1755 = vadd.f32 0.0, %v1754
        %v1756 = vpop.f32.mrf.mxu0
        %1757 = vmatprep.mubr.f32.mxu0 %v1570
        %1758 = vmatmul.mubr.f32.gmra.mxu0 %v1569
        %v1759 = vpop.f32.mrf.mxu0
        %v1760 = vadd.f32 0.0, %v1759
        %v1761 = vpop.f32.mrf.mxu0
        %1762 = vmatprep.mubr.f32.mxu0 %v1572
        %1763 = vmatmul.mubr.f32.gmra.mxu0 %v1571
        %v1764 = vpop.f32.mrf.mxu0
        %v1765 = vadd.f32 0.0, %v1764
        %v1766 = vpop.f32.mrf.mxu0
        %1767 = vmatprep.mubr.f32.mxu0 %v1574
        %1768 = vmatmul.mubr.f32.gmra.mxu0 %v1573
        %v1769 = vpop.f32.mrf.mxu0
        %v1770 = vadd.f32 0.0, %v1769
        %v1771 = vpop.f32.mrf.mxu0
        %1772 = vmatprep.mubr.f32.mxu0 %v1576
        %1773 = vmatmul.mubr.f32.gmra.mxu0 %v1575
        %v1774 = vpop.f32.mrf.mxu0
        %v1775 = vadd.f32 0.0, %v1774
        %v1776 = vpop.f32.mrf.mxu0
        %1777 = vmatprep.mubr.f32.mxu0 %v1578
        %1778 = vmatmul.mubr.f32.gmra.mxu0 %v1577
        %v1779 = vpop.f32.mrf.mxu0
        %v1780 = vadd.f32 0.0, %v1779
        %v1781 = vpop.f32.mrf.mxu0
        %1782 = vmatprep.mubr.f32.mxu0 %v1580
        %1783 = vmatmul.mubr.f32.gmra.mxu0 %v1579
        %v1784 = vpop.f32.mrf.mxu0
        %v1785 = vadd.f32 0.0, %v1784
        %v1786 = vpop.f32.mrf.mxu0
        %1787 = vmatprep.mubr.f32.mxu0 %v1582
        %1788 = vmatmul.mubr.f32.gmra.mxu0 %v1581
        %v1789 = vpop.f32.mrf.mxu0
        %v1790 = vadd.f32 0.0, %v1789
        %v1791 = vpop.f32.mrf.mxu0
        %1792 = vmatprep.mubr.f32.mxu0 %v1584
        %1793 = vmatmul.mubr.f32.gmra.mxu0 %v1583
        %v1794 = vpop.f32.mrf.mxu0
        %v1795 = vadd.f32 0.0, %v1794
        %v1796 = vpop.f32.mrf.mxu0
        %1797 = vmatprep.mubr.f32.mxu0 %v1586
        %1798 = vmatmul.mubr.f32.gmra.mxu0 %v1585
        %v1799 = vpop.f32.mrf.mxu0
        %v1800 = vadd.f32 0.0, %v1799
        %v1801 = vpop.f32.mrf.mxu0
        %1802 = vmatprep.mubr.f32.mxu0 %v1588
        %1803 = vmatmul.mubr.f32.gmra.mxu0 %v1587
        %v1804 = vpop.f32.mrf.mxu0
        %v1805 = vadd.f32 0.0, %v1804
        %v1806 = vpop.f32.mrf.mxu0
        %1807 = vmatprep.mubr.f32.mxu0 %v1590
        %1808 = vmatmul.mubr.f32.gmra.mxu0 %v1589
        %v1809 = vpop.f32.mrf.mxu0
        %v1810 = vadd.f32 0.0, %v1809
        %v1811 = vpop.f32.mrf.mxu0
        %1812 = vdwg.mxu0
        %v1813 = vld [vmem:[#allocation2] sm:$0xff]
        %v1814 = vld [vmem:[#allocation2 + $0x8] sm:$0xff]
        %v1815 = vld [vmem:[#allocation2 + $0x10] sm:$0xff]
        %v1816 = vld [vmem:[#allocation2 + $0x18] sm:$0xff]
        %v1817 = vld [vmem:[#allocation2 + $0x20] sm:$0xff]
        %v1818 = vld [vmem:[#allocation2 + $0x28] sm:$0xff]
        %v1819 = vld [vmem:[#allocation2 + $0x30] sm:$0xff]
        %v1820 = vld [vmem:[#allocation2 + $0x38] sm:$0xff]
        %v1821 = vld [vmem:[#allocation2 + $0x40] sm:$0xff]
        %v1822 = vld [vmem:[#allocation2 + $0x48] sm:$0xff]
        %v1823 = vld [vmem:[#allocation2 + $0x50] sm:$0xff]
        %v1824 = vld [vmem:[#allocation2 + $0x58] sm:$0xff]
        %v1825 = vld [vmem:[#allocation2 + $0x60] sm:$0xff]
        %v1826 = vld [vmem:[#allocation2 + $0x68] sm:$0xff]
        %v1827 = vld [vmem:[#allocation2 + $0x70] sm:$0xff]
        %v1828 = vld [vmem:[#allocation2 + $0x78] sm:$0xff]
        %v1829 = vld [vmem:[#allocation2 + $0x80] sm:$0xff]
        %v1830 = vld [vmem:[#allocation2 + $0x88] sm:$0xff]
        %v1831 = vld [vmem:[#allocation2 + $0x90] sm:$0xff]
        %v1832 = vld [vmem:[#allocation2 + $0x98] sm:$0xff]
        %v1833 = vld [vmem:[#allocation2 + $0xa0] sm:$0xff]
        %v1834 = vld [vmem:[#allocation2 + $0xa8] sm:$0xff]
        %v1835 = vld [vmem:[#allocation2 + $0xb0] sm:$0xff]
        %v1836 = vld [vmem:[#allocation2 + $0xb8] sm:$0xff]
        %v1837 = vld [vmem:[#allocation2 + $0xc0] sm:$0xff]
        %v1838 = vadd.f32 %v1813, %v1690
        %v1839 = vadd.f32 %v1814, %v1695
        %v1840 = vadd.f32 %v1815, %v1700
        %v1841 = vadd.f32 %v1816, %v1705
        %v1842 = vadd.f32 %v1817, %v1710
        %v1843 = vadd.f32 %v1818, %v1715
        %v1844 = vadd.f32 %v1819, %v1720
        %v1845 = vadd.f32 %v1820, %v1725
        %v1846 = vadd.f32 %v1821, %v1730
        %v1847 = vadd.f32 %v1822, %v1735
        %v1848 = vadd.f32 %v1823, %v1740
        %v1849 = vadd.f32 %v1824, %v1745
        %v1850 = vadd.f32 %v1825, %v1750
        %v1851 = vadd.f32 %v1826, %v1755
        %v1852 = vadd.f32 %v1827, %v1760
        %v1853 = vadd.f32 %v1828, %v1765
        %v1854 = vadd.f32 %v1829, %v1770
        %v1855 = vadd.f32 %v1830, %v1775
        %v1856 = vadd.f32 %v1831, %v1780
        %v1857 = vadd.f32 %v1832, %v1785
        %v1858 = vadd.f32 %v1833, %v1790
        %v1859 = vadd.f32 %v1834, %v1795
        %v1860 = vadd.f32 %v1835, %v1800
        %v1861 = vadd.f32 %v1836, %v1805
        %v1862 = vadd.f32 %v1837, %v1810
        %1863 = vst [vmem:[#allocation2] sm:$0xff] %v1838
        %1864 = vst [vmem:[#allocation2 + $0x8] sm:$0xff] %v1839
        %1865 = vst [vmem:[#allocation2 + $0x10] sm:$0xff] %v1840
        %1866 = vst [vmem:[#allocation2 + $0x18] sm:$0xff] %v1841
        %1867 = vst [vmem:[#allocation2 + $0x20] sm:$0xff] %v1842
        %1868 = vst [vmem:[#allocation2 + $0x28] sm:$0xff] %v1843
        %1869 = vst [vmem:[#allocation2 + $0x30] sm:$0xff] %v1844
        %1870 = vst [vmem:[#allocation2 + $0x38] sm:$0xff] %v1845
        %1871 = vst [vmem:[#allocation2 + $0x40] sm:$0xff] %v1846
        %1872 = vst [vmem:[#allocation2 + $0x48] sm:$0xff] %v1847
        %1873 = vst [vmem:[#allocation2 + $0x50] sm:$0xff] %v1848
        %1874 = vst [vmem:[#allocation2 + $0x58] sm:$0xff] %v1849
        %1875 = vst [vmem:[#allocation2 + $0x60] sm:$0xff] %v1850
        %1876 = vst [vmem:[#allocation2 + $0x68] sm:$0xff] %v1851
        %1877 = vst [vmem:[#allocation2 + $0x70] sm:$0xff] %v1852
        %1878 = vst [vmem:[#allocation2 + $0x78] sm:$0xff] %v1853
        %1879 = vst [vmem:[#allocation2 + $0x80] sm:$0xff] %v1854
        %1880 = vst [vmem:[#allocation2 + $0x88] sm:$0xff] %v1855
        %1881 = vst [vmem:[#allocation2 + $0x90] sm:$0xff] %v1856
        %1882 = vst [vmem:[#allocation2 + $0x98] sm:$0xff] %v1857
        %1883 = vst [vmem:[#allocation2 + $0xa0] sm:$0xff] %v1858
        %1884 = vst [vmem:[#allocation2 + $0xa8] sm:$0xff] %v1859
        %1885 = vst [vmem:[#allocation2 + $0xb0] sm:$0xff] %v1860
        %1886 = vst [vmem:[#allocation2 + $0xb8] sm:$0xff] %v1861
        %1887 = vst [vmem:[#allocation2 + $0xc0] sm:$0xff] %v1862
        %v1888 = vld [vmem:[#allocation2] sm:$0xff]
        %v1889 = vld [vmem:[#allocation2 + $0x8] sm:$0xff]
        %v1890 = vld [vmem:[#allocation2 + $0x10] sm:$0xff]
        %v1891 = vld [vmem:[#allocation2 + $0x18] sm:$0xff]
        %v1892 = vld [vmem:[#allocation2 + $0x20] sm:$0xff]
        %v1893 = vld [vmem:[#allocation2 + $0x28] sm:$0xff]
        %v1894 = vld [vmem:[#allocation2 + $0x30] sm:$0xff]
        %v1895 = vld [vmem:[#allocation2 + $0x38] sm:$0xff]
        %v1896 = vld [vmem:[#allocation2 + $0x40] sm:$0xff]
        %v1897 = vld [vmem:[#allocation2 + $0x48] sm:$0xff]
        %v1898 = vld [vmem:[#allocation2 + $0x50] sm:$0xff]
        %v1899 = vld [vmem:[#allocation2 + $0x58] sm:$0xff]
        %v1900 = vld [vmem:[#allocation2 + $0x60] sm:$0xff]
        %v1901 = vld [vmem:[#allocation2 + $0x68] sm:$0xff]
        %v1902 = vld [vmem:[#allocation2 + $0x70] sm:$0xff]
        %v1903 = vld [vmem:[#allocation2 + $0x78] sm:$0xff]
        %v1904 = vld [vmem:[#allocation2 + $0x80] sm:$0xff]
        %v1905 = vld [vmem:[#allocation2 + $0x88] sm:$0xff]
        %v1906 = vld [vmem:[#allocation2 + $0x90] sm:$0xff]
        %v1907 = vld [vmem:[#allocation2 + $0x98] sm:$0xff]
        %v1908 = vld [vmem:[#allocation2 + $0xa0] sm:$0xff]
        %v1909 = vld [vmem:[#allocation2 + $0xa8] sm:$0xff]
        %v1910 = vld [vmem:[#allocation2 + $0xb0] sm:$0xff]
        %v1911 = vld [vmem:[#allocation2 + $0xb8] sm:$0xff]
        %v1912 = vld [vmem:[#allocation2 + $0xc0] sm:$0xff]
        %v1913 = vld [vmem:[%s4] sm:$0x1]
        %v1915 = vlaneseq
        %v1916 = vshrl.u32 %v1915, 7
        %v1917 = vsub.s32 0, %v1916
        %v1918 = vrot.slane %v1913, %v1917
        %v1920 = vadd.f32 %v1888, %v1918
        %v1921 = vadd.f32 %v1889, %v1918
        %v1922 = vadd.f32 %v1890, %v1918
        %v1923 = vadd.f32 %v1891, %v1918
        %v1924 = vadd.f32 %v1892, %v1918
        %v1925 = vadd.f32 %v1893, %v1918
        %v1926 = vadd.f32 %v1894, %v1918
        %v1927 = vadd.f32 %v1895, %v1918
        %v1928 = vadd.f32 %v1896, %v1918
        %v1929 = vadd.f32 %v1897, %v1918
        %v1930 = vadd.f32 %v1898, %v1918
        %v1931 = vadd.f32 %v1899, %v1918
        %v1932 = vadd.f32 %v1900, %v1918
        %v1933 = vadd.f32 %v1901, %v1918
        %v1934 = vadd.f32 %v1902, %v1918
        %v1935 = vadd.f32 %v1903, %v1918
        %v1936 = vadd.f32 %v1904, %v1918
        %v1937 = vadd.f32 %v1905, %v1918
        %v1938 = vadd.f32 %v1906, %v1918
        %v1939 = vadd.f32 %v1907, %v1918
        %v1940 = vadd.f32 %v1908, %v1918
        %v1941 = vadd.f32 %v1909, %v1918
        %v1942 = vadd.f32 %v1910, %v1918
        %v1943 = vadd.f32 %v1911, %v1918
        %v1944 = vadd.f32 %v1912, %v1918
        %1945 = vst [vmem:[%s290] sm:$0xff] %v1920
        %1946 = vst [vmem:[%s290 + $0x8] sm:$0xff] %v1921
        %1947 = vst [vmem:[%s290 + $0x10] sm:$0xff] %v1922
        %1948 = vst [vmem:[%s290 + $0x18] sm:$0xff] %v1923
        %1949 = vst [vmem:[%s290 + $0x20] sm:$0xff] %v1924
        %1950 = vst [vmem:[%s290 + $0x28] sm:$0xff] %v1925
        %1951 = vst [vmem:[%s290 + $0x30] sm:$0xff] %v1926
        %1952 = vst [vmem:[%s290 + $0x38] sm:$0xff] %v1927
        %1953 = vst [vmem:[%s290 + $0x40] sm:$0xff] %v1928
        %1954 = vst [vmem:[%s290 + $0x48] sm:$0xff] %v1929
        %1955 = vst [vmem:[%s290 + $0x50] sm:$0xff] %v1930
        %1956 = vst [vmem:[%s290 + $0x58] sm:$0xff] %v1931
        %1957 = vst [vmem:[%s290 + $0x60] sm:$0xff] %v1932
        %1958 = vst [vmem:[%s290 + $0x68] sm:$0xff] %v1933
        %1959 = vst [vmem:[%s290 + $0x70] sm:$0xff] %v1934
        %1960 = vst [vmem:[%s290 + $0x78] sm:$0xff] %v1935
        %1961 = vst [vmem:[%s290 + $0x80] sm:$0xff] %v1936
        %1962 = vst [vmem:[%s290 + $0x88] sm:$0xff] %v1937
        %1963 = vst [vmem:[%s290 + $0x90] sm:$0xff] %v1938
        %1964 = vst [vmem:[%s290 + $0x98] sm:$0xff] %v1939
        %1965 = vst [vmem:[%s290 + $0xa0] sm:$0xff] %v1940
        %1966 = vst [vmem:[%s290 + $0xa8] sm:$0xff] %v1941
        %1967 = vst [vmem:[%s290 + $0xb0] sm:$0xff] %v1942
        %1968 = vst [vmem:[%s290 + $0xb8] sm:$0xff] %v1943
        %1969 = vst [vmem:[%s290 + $0xc0] sm:$0xff] %v1944
        %s1970 = sand.u32 %s142, 1
        %s1971 = scalar_lea.sflag [#allocation5], %s1970
        %s1972 = sand.u32 %s142, 1
        %s1973 = smul.addr %s1972, 200
        %s1974 = scalar_lea.vmem [#allocation11], %s1973
        // Predicated region
        $region57: #{tpu_custom_call.1} parent=39 // pred_check
          %p1975 = pneg %p152
        $region58: #{tpu_custom_call.1} parent=39 // pred_check_branch
          %1977 = sbr.rel (%p1975) target = $region60
        $region59: #{tpu_custom_call.1} parent=39 // pred_region
          %s1978 = smul.u32 25, %s24
          %s1979 = ssub.s32 49, %s1978
          %p1980 = scmp.lt.s32.totalorder %s1979, 25
          %s1981 = scalar_select %p1980, %s1979, 25
          %s1982 = smul.u32 128, %s1981
          %s1984 = ssub.s32 3200, %s1982
          %1985 = vsyncadd %s1971, %s1984
          %p1986 = scmp.ne.s32.totalorder 0, %s1982
          %s1987 = smul.addr %s1978, 128
          %s1988 = scalar_lea.hbm %s5, %s1987
          %s1989 = smul.u32 8, %s1981
          %s1990 = sshll.u32 %s1974, 4
          %s1991 = int_to_ptr.vmem [resolvable:$true] %s1990
          %s1992 = sshll.u32 %s1989, 4
          %1996 = dma.vmem_to_hbm [thread:$0]  (%p1986), %s1991, %s1992, %s1988, %s1971, 128, 128, 8
        $region60: #{tpu_custom_call.1} parent=39 // pred_fallthru
          _
      $region40: #{tpu_custom_call.1} parent=5 // pred_fallthru
        _
      %p1997 = scmp.le.s32.totalorder 2, %s19
      // Predicated region
      $region61: #{tpu_custom_call.1} parent=5 // pred_check
        %p1998 = pneg %p1997
      $region62: #{tpu_custom_call.1} parent=5 // pred_check_branch
        %2000 = sbr.rel (%p1998) target = $region64
      $region63: #{tpu_custom_call.1} parent=5 // pred_region
        %s2001 = ssub.s32 %s19, 2
        // Predicated region
        $region65: #{tpu_custom_call.1} parent=63 // pred_check
          %p2002 = pneg %p158
        $region66: #{tpu_custom_call.1} parent=63 // pred_check_branch
          %2004 = sbr.rel (%p2002) target = $region68
        $region67: #{tpu_custom_call.1} parent=63 // pred_region
          %s2005 = sand.u32 %s143, 1
          %s2006 = scalar_lea.sflag [#allocation5], %s2005
          %s2007 = sand.u32 %s143, 1
          %s2008 = smul.addr %s2007, 200
          %s2009 = scalar_lea.vmem [#allocation11], %s2008
          %2010 = dma.done %s2006, 3200
        $region68: #{tpu_custom_call.1} parent=63 // pred_fallthru
          _
      $region64: #{tpu_custom_call.1} parent=5 // pred_fallthru
        _
    $region6: #{tpu_custom_call.1} parent=1 // loop_footer
      %s23 = sadd.s32 1, %s19
    $region7: #{tpu_custom_call.1} parent=1 // loop_footer_branch
      %18 = sbr.rel target = $region3
    $region8: #{tpu_custom_call.1} parent=1 // loop_exit
      _
    %2011 = vsyncpa [#allocation4], 1
    %s2012 = scalar_lea.sflag [#allocation4], 1
    %2013 = vsyncpa %s2012, 1
    %2014 = vsyncpa [#allocation7], 1
    %2015 = vsyncpa [#allocation10], 1
    %2016 = vsyncpa [#allocation5], 1
    %s2017 = scalar_lea.sflag [#allocation5], 1
    %2018 = vsyncpa %s2017, 1

</llo_original>
